<compile_context>
chip_gen: v7x
topology: tpu7x:2x2x1
jax: 0.10.0
libtpu: 0.0.40
codegen_flags: <defaults>
</compile_context>

<pallas_src>
import math

import jax
import jax.numpy as jnp
from jax.experimental import pallas as pl
from jax.experimental.pallas import tpu as pltpu


def _round_up(v, m):
    return ((v + m - 1) // m) * m


def _pick_tile(dim_pad, cap=512):
    """Largest multiple of 128 that divides dim_pad (itself a multiple of 128)
    and is <= cap."""
    q = dim_pad // 128
    best = 1
    for d in range(1, q + 1):
        if q % d == 0 and 128 * d <= cap:
            best = d
    return 128 * best


def _matmul_kernel(a_ref, b_ref, o_ref, acc_ref):
    # Canonical tiled matmul: f32 accumulator scratch, init at k==0,
    # write-out at the last k step.
    @pl.when(pl.program_id(2) == 0)
    def _init():
        acc_ref[...] = jnp.zeros_like(acc_ref)

    acc_ref[...] += jnp.dot(
        a_ref[...], b_ref[...], preferred_element_type=jnp.float32
    )

    @pl.when(pl.program_id(2) == pl.num_programs(2) - 1)
    def _store():
        o_ref[...] = acc_ref[...].astype(o_ref.dtype)


def _matmul(a, b, *, out_dtype, tm_cap=512, tn_cap=512, tk_cap=512):
    """C = A @ B for padded (multiples of 128) 2-D operands."""
    M, K = a.shape
    K2, N = b.shape
    assert K2 == K
    assert M % 128 == 0 and K % 128 == 0 and N % 128 == 0

    tm = _pick_tile(M, tm_cap)
    tn = _pick_tile(N, tn_cap)
    tk = _pick_tile(K, tk_cap)

    cost = pl.CostEstimate(
        flops=2 * M * N * K,
        transcendentals=0,
        bytes_accessed=(
            M * K * a.dtype.itemsize
            + K * N * b.dtype.itemsize
            + M * N * jnp.dtype(out_dtype).itemsize
        ),
    )

    return pl.pallas_call(
        _matmul_kernel,
        out_shape=jax.ShapeDtypeStruct((M, N), out_dtype),
        grid_spec=pltpu.PrefetchScalarGridSpec(
            num_scalar_prefetch=0,
            grid=(M // tm, N // tn, K // tk),
            in_specs=[
                pl.BlockSpec((tm, tk), lambda i, j, k: (i, k)),
                pl.BlockSpec((tk, tn), lambda i, j, k: (k, j)),
            ],
            out_specs=pl.BlockSpec((tm, tn), lambda i, j, k: (i, j)),
            scratch_shapes=[pltpu.VMEM((tm, tn), jnp.float32)],
        ),
        compiler_params=pltpu.CompilerParams(
            # Row / col axes are independent (megacore-shardable on v7x);
            # only the contraction axis is sequential (accumulator).
            dimension_semantics=("parallel", "parallel", "arbitrary"),
        ),
        cost_estimate=cost,
    )(a, b)


@jax.jit
def encoder_forward(feat, adj, weight):
    """Returns (feat_embedding, x) = (feat @ W, adj @ (feat @ W))."""
    N, in_feat = feat.shape
    in_feat2, out_feat = weight.shape
    assert in_feat2 == in_feat
    assert adj.shape == (N, N)

    n_pad = _round_up(N, 128)
    in_pad = _round_up(in_feat, 128)
    out_pad = _round_up(out_feat, 128)

    # --- Pass 1: embedding h = feat @ W  (f32 inputs; cheap vs the adj pass,
    # and keeps the returned embedding close to PyTorch's f32 mm). ---
    feat_p = jnp.pad(feat, ((0, n_pad - N), (0, in_pad - in_feat)))
    w_p = jnp.pad(weight, ((0, in_pad - in_feat), (0, out_pad - out_feat)))
    h_p = _matmul(feat_p, w_p, out_dtype=jnp.float32)

    # --- Pass 2: x = adj @ h  (HBM-bandwidth bound on adj -> feed bf16).
    # Pad the *bf16* copy of adj so the big pad/copy moves 2-byte data.
    # NOTE: if adj is static across training steps, this cast+pad can be
    # hoisted out of the step and done once by the caller. ---
    adj_p = jnp.pad(
        adj.astype(jnp.bfloat16), ((0, n_pad - N), (0, n_pad - N))
    )
    h_bf = h_p.astype(jnp.bfloat16)
    x_p = _matmul(adj_p, h_bf, out_dtype=jnp.float32)

    return h_p[:N, :out_feat], x_p[:N, :out_feat]


def xavier_uniform(key, in_feat, out_feat):
    # Matches torch.nn.init.xavier_uniform_ for a (in_feat, out_feat) tensor.
    bound = math.sqrt(6.0 / (in_feat + out_feat))
    return jax.random.uniform(
        key, (in_feat, out_feat), dtype=jnp.float32, minval=-bound, maxval=bound
    )


if __name__ == "__main__":
    # Deliberately non-tile-aligned sizes to exercise padding/slicing.
    # N=300 now pads to 384 (tm=tk=384), not 512.
    N, IN_FEAT, OUT_FEAT = 300, 200, 64

    key = jax.random.PRNGKey(0)
    k_feat, k_adj, k_w = jax.random.split(key, 3)

    feat = jax.random.normal(k_feat, (N, IN_FEAT), dtype=jnp.float32)
    # torch.spmm with a sparse adjacency is mathematically identical to a
    # dense matmul; build a dense row-normalized random graph.
    adj_raw = (jax.random.uniform(k_adj, (N, N)) < 0.1).astype(jnp.float32)
    adj_raw = adj_raw + jnp.eye(N, dtype=jnp.float32)
    adj = adj_raw / jnp.sum(adj_raw, axis=1, keepdims=True)

    weight = xavier_uniform(k_w, IN_FEAT, OUT_FEAT)

    h, x = encoder_forward(feat, adj, weight)
    h, x = jax.block_until_ready((h, x))

    # High-precision f32 reference; tolerances cover the bf16 adj stream.
    ref_h = jnp.dot(feat, weight, precision=jax.lax.Precision.HIGHEST)
    ref_x = jnp.dot(adj, ref_h, precision=jax.lax.Precision.HIGHEST)

    assert h.shape == (N, OUT_FEAT) and x.shape == (N, OUT_FEAT)
    assert jnp.allclose(h, ref_h, atol=5e-2, rtol=5e-2)
    assert jnp.allclose(x, ref_x, atol=5e-2, rtol=5e-2)

    print("KERNEL_OK")
</pallas_src>

<mosaic_0001>
module attributes {stable_mosaic.version = 11 : i64} {
  func.func @_matmul_kernel(%arg0: i32, %arg1: i32, %arg2: i32, %arg3: memref<384x384xbf16, #tpu.memory_space<vmem>>, %arg4: memref<384x128xbf16, #tpu.memory_space<vmem>>, %arg5: memref<384x128xf32, #tpu.memory_space<vmem>>, %arg6: memref<384x128xf32, #tpu.memory_space<vmem>>) attributes {dimension_semantics = [#tpu.dimension_semantics<parallel>, #tpu.dimension_semantics<parallel>, #tpu.dimension_semantics<arbitrary>], iteration_bounds = array<i64: 1, 1, 1>, scalar_prefetch = 0 : i64, scratch_operands = 1 : i64, tpu.core_type = #tpu.core_type<tc>, window_params = [{transform_indices = @transform_0, window_bounds = array<i64: 384, 384>}, {transform_indices = @transform_1, window_bounds = array<i64: 384, 128>}, {transform_indices = @transform_2, window_bounds = array<i64: 384, 128>}]} {
    %c0_i32 = arith.constant 0 : i32
    %0 = arith.cmpi eq, %arg2, %c0_i32 : i32
    %1 = arith.extui %0 : i1 to i32
    %c0_i32_0 = arith.constant 0 : i32
    %2 = arith.cmpi ne, %1, %c0_i32_0 : i32
    scf.if %2 {
      %cst_10 = arith.constant 0.000000e+00 : f32
      %12 = vector.broadcast %cst_10 : f32 to vector<384x128xf32>
      %c0_11 = arith.constant 0 : index
      %c0_12 = arith.constant 0 : index
      %13 = vector.load %arg6[%c0_11, %c0_12] : memref<384x128xf32, #tpu.memory_space<vmem>>, vector<384x128xf32>
      tpu.vector_store %arg6[%c0_11, %c0_12], %12 {strides = array<i32>} : memref<384x128xf32, #tpu.memory_space<vmem>>, vector<384x128xf32>,
    } else {
    }
    %c0 = arith.constant 0 : index
    %c0_1 = arith.constant 0 : index
    %3 = vector.load %arg6[%c0, %c0_1] : memref<384x128xf32, #tpu.memory_space<vmem>>, vector<384x128xf32>
    %c0_2 = arith.constant 0 : index
    %c0_3 = arith.constant 0 : index
    %4 = vector.load %arg3[%c0_2, %c0_3] : memref<384x384xbf16, #tpu.memory_space<vmem>>, vector<384x384xbf16>
    %c0_4 = arith.constant 0 : index
    %c0_5 = arith.constant 0 : index
    %5 = vector.load %arg4[%c0_4, %c0_5] : memref<384x128xbf16, #tpu.memory_space<vmem>>, vector<384x128xbf16>
    %cst = arith.constant dense<0.000000e+00> : vector<384x128xf32>
    %6 = tpu.matmul %4, %5, %cst {dimension_numbers = #tpu.dot_dimension_numbers<[1], [0], [0], [1], [0, 0, 1, 1], [], []>} : vector<384x384xbf16>, vector<384x128xbf16>, vector<384x128xf32> -> vector<384x128xf32>
    %7 = arith.addf %3, %6 : vector<384x128xf32>
    %c0_6 = arith.constant 0 : index
    %c0_7 = arith.constant 0 : index
    %8 = vector.load %arg6[%c0_6, %c0_7] : memref<384x128xf32, #tpu.memory_space<vmem>>, vector<384x128xf32>
    tpu.vector_store %arg6[%c0_6, %c0_7], %7 {strides = array<i32>} : memref<384x128xf32, #tpu.memory_space<vmem>>, vector<384x128xf32>,
    %c0_i32_8 = arith.constant 0 : i32
    %9 = arith.cmpi eq, %arg2, %c0_i32_8 : i32
    %10 = arith.extui %9 : i1 to i32
    %c0_i32_9 = arith.constant 0 : i32
    %11 = arith.cmpi ne, %10, %c0_i32_9 : i32
    scf.if %11 {
      %c0_10 = arith.constant 0 : index
      %c0_11 = arith.constant 0 : index
      %12 = vector.load %arg6[%c0_10, %c0_11] : memref<384x128xf32, #tpu.memory_space<vmem>>, vector<384x128xf32>
      %c0_12 = arith.constant 0 : index
      %c0_13 = arith.constant 0 : index
      %13 = vector.load %arg5[%c0_12, %c0_13] : memref<384x128xf32, #tpu.memory_space<vmem>>, vector<384x128xf32>
      tpu.vector_store %arg5[%c0_12, %c0_13], %12 {strides = array<i32>} : memref<384x128xf32, #tpu.memory_space<vmem>>, vector<384x128xf32>,
    } else {
    }
    return
  }
  func.func @transform_0(%arg0: i32, %arg1: i32, %arg2: i32) -> (i32, i32) {
    %c0_i32 = arith.constant 0 : i32
    return %arg0, %arg2 : i32, i32
  }
  func.func @transform_1(%arg0: i32, %arg1: i32, %arg2: i32) -> (i32, i32) {
    %c0_i32 = arith.constant 0 : i32
    return %arg2, %arg1 : i32, i32
  }
  func.func @transform_2(%arg0: i32, %arg1: i32, %arg2: i32) -> (i32, i32) {
    %c0_i32 = arith.constant 0 : i32
    return %arg0, %arg1 : i32, i32
  }
}

module attributes {stable_mosaic.version = 11 : i64} {
  func.func @_matmul_kernel(%arg0: i32, %arg1: i32, %arg2: i32, %arg3: memref<384x256xf32, #tpu.memory_space<vmem>>, %arg4: memref<256x128xf32, #tpu.memory_space<vmem>>, %arg5: memref<384x128xf32, #tpu.memory_space<vmem>>, %arg6: memref<384x128xf32, #tpu.memory_space<vmem>>) attributes {dimension_semantics = [#tpu.dimension_semantics<parallel>, #tpu.dimension_semantics<parallel>, #tpu.dimension_semantics<arbitrary>], iteration_bounds = array<i64: 1, 1, 1>, scalar_prefetch = 0 : i64, scratch_operands = 1 : i64, tpu.core_type = #tpu.core_type<tc>, window_params = [{transform_indices = @transform_0, window_bounds = array<i64: 384, 256>}, {transform_indices = @transform_1, window_bounds = array<i64: 256, 128>}, {transform_indices = @transform_2, window_bounds = array<i64: 384, 128>}]} {
    %c0_i32 = arith.constant 0 : i32
    %0 = arith.cmpi eq, %arg2, %c0_i32 : i32
    %1 = arith.extui %0 : i1 to i32
    %c0_i32_0 = arith.constant 0 : i32
    %2 = arith.cmpi ne, %1, %c0_i32_0 : i32
    scf.if %2 {
      %cst_10 = arith.constant 0.000000e+00 : f32
      %12 = vector.broadcast %cst_10 : f32 to vector<384x128xf32>
      %c0_11 = arith.constant 0 : index
      %c0_12 = arith.constant 0 : index
      %13 = vector.load %arg6[%c0_11, %c0_12] : memref<384x128xf32, #tpu.memory_space<vmem>>, vector<384x128xf32>
      tpu.vector_store %arg6[%c0_11, %c0_12], %12 {strides = array<i32>} : memref<384x128xf32, #tpu.memory_space<vmem>>, vector<384x128xf32>,
    } else {
    }
    %c0 = arith.constant 0 : index
    %c0_1 = arith.constant 0 : index
    %3 = vector.load %arg6[%c0, %c0_1] : memref<384x128xf32, #tpu.memory_space<vmem>>, vector<384x128xf32>
    %c0_2 = arith.constant 0 : index
    %c0_3 = arith.constant 0 : index
    %4 = vector.load %arg3[%c0_2, %c0_3] : memref<384x256xf32, #tpu.memory_space<vmem>>, vector<384x256xf32>
    %c0_4 = arith.constant 0 : index
    %c0_5 = arith.constant 0 : index
    %5 = vector.load %arg4[%c0_4, %c0_5] : memref<256x128xf32, #tpu.memory_space<vmem>>, vector<256x128xf32>
    %cst = arith.constant dense<0.000000e+00> : vector<384x128xf32>
    %6 = tpu.matmul %4, %5, %cst {dimension_numbers = #tpu.dot_dimension_numbers<[1], [0], [0], [1], [0, 0, 1, 1], [], []>} : vector<384x256xf32>, vector<256x128xf32>, vector<384x128xf32> -> vector<384x128xf32>
    %7 = arith.addf %3, %6 : vector<384x128xf32>
    %c0_6 = arith.constant 0 : index
    %c0_7 = arith.constant 0 : index
    %8 = vector.load %arg6[%c0_6, %c0_7] : memref<384x128xf32, #tpu.memory_space<vmem>>, vector<384x128xf32>
    tpu.vector_store %arg6[%c0_6, %c0_7], %7 {strides = array<i32>} : memref<384x128xf32, #tpu.memory_space<vmem>>, vector<384x128xf32>,
    %c0_i32_8 = arith.constant 0 : i32
    %9 = arith.cmpi eq, %arg2, %c0_i32_8 : i32
    %10 = arith.extui %9 : i1 to i32
    %c0_i32_9 = arith.constant 0 : i32
    %11 = arith.cmpi ne, %10, %c0_i32_9 : i32
    scf.if %11 {
      %c0_10 = arith.constant 0 : index
      %c0_11 = arith.constant 0 : index
      %12 = vector.load %arg6[%c0_10, %c0_11] : memref<384x128xf32, #tpu.memory_space<vmem>>, vector<384x128xf32>
      %c0_12 = arith.constant 0 : index
      %c0_13 = arith.constant 0 : index
      %13 = vector.load %arg5[%c0_12, %c0_13] : memref<384x128xf32, #tpu.memory_space<vmem>>, vector<384x128xf32>
      tpu.vector_store %arg5[%c0_12, %c0_13], %12 {strides = array<i32>} : memref<384x128xf32, #tpu.memory_space<vmem>>, vector<384x128xf32>,
    } else {
    }
    return
  }
  func.func @transform_0(%arg0: i32, %arg1: i32, %arg2: i32) -> (i32, i32) {
    %c0_i32 = arith.constant 0 : i32
    return %arg0, %arg2 : i32, i32
  }
  func.func @transform_1(%arg0: i32, %arg1: i32, %arg2: i32) -> (i32, i32) {
    %c0_i32 = arith.constant 0 : i32
    return %arg2, %arg1 : i32, i32
  }
  func.func @transform_2(%arg0: i32, %arg1: i32, %arg2: i32) -> (i32, i32) {
    %c0_i32 = arith.constant 0 : i32
    return %arg0, %arg1 : i32, i32
  }
}

</mosaic_0001>

<llo_original>
// kernel: encoder_forward.2
$region0: #{encoder_forward.2}
  #allocation0 [shape = 'u32[]', space=smem, size = 0x4, offset = 0x4, fixed_abs, tag = 'smem constant byte address 0x4 - core index']
  #allocation1 [shape = 'u32[144,128]{1,0:T(1,128)}', space=vmem, size = 0x12000, scoped, tag = 'internal scratch']
  #allocation2 [shape = 'f32[384,128]{1,0:T(8,128)}', space=vmem, size = 0x30000, scoped, tag = 'scratch operand']
  %s0 = inlined_call_operand.vmem [shape: f32[384,256], index: 0, kind: input, shape index: {}]
  %s1 = inlined_call_operand.vmem [shape: f32[256,128], index: 1, kind: input, shape index: {}]
  %s2 = inlined_call_operand.vmem [shape: f32[384,128], index: 2, kind: output, shape index: {}]
  %s3 = sld [smem:[#allocation0]]
  $region26: #{encoder_forward.2} parent=0
    _
  %s5 = ssub.s32 1, %s3
  %s6 = scalar_select 0, %s5, %s3
  // Predicated region
  $region2: #{encoder_forward.2} parent=0 // pred_check
    _
  $region3: #{encoder_forward.2} parent=0 // pred_check_branch
    %8 = sbr.rel (0) target = $region5
  $region4: #{encoder_forward.2} parent=0 // pred_region
    _
  $region5: #{encoder_forward.2} parent=0 // pred_fallthru
    _
  // Predicated region
  $region6: #{encoder_forward.2} parent=0 // pred_check
    _
  $region7: #{encoder_forward.2} parent=0 // pred_check_branch
    %10 = sbr.rel (0) target = $region9
  $region8: #{encoder_forward.2} parent=0 // pred_region
    _
  $region9: #{encoder_forward.2} parent=0 // pred_fallthru
    _
  %p11 = scmp.eq.s32.totalorder 0, 0
  // Predicated region
  $region10: #{encoder_forward.2} parent=0 // pred_check
    %p12 = pneg %p11
  $region11: #{encoder_forward.2} parent=0 // pred_check_branch
    %14 = sbr.rel (%p12) target = $region13
  $region12: #{encoder_forward.2} parent=0 // pred_region
    %15 = vst [vmem:[#allocation2] sm:$0xff] 0.0
    %16 = vst [vmem:[#allocation2 + $0x8] sm:$0xff] 0.0
    %17 = vst [vmem:[#allocation2 + $0x10] sm:$0xff] 0.0
    %18 = vst [vmem:[#allocation2 + $0x18] sm:$0xff] 0.0
    %19 = vst [vmem:[#allocation2 + $0x20] sm:$0xff] 0.0
    %20 = vst [vmem:[#allocation2 + $0x28] sm:$0xff] 0.0
    %21 = vst [vmem:[#allocation2 + $0x30] sm:$0xff] 0.0
    %22 = vst [vmem:[#allocation2 + $0x38] sm:$0xff] 0.0
    %23 = vst [vmem:[#allocation2 + $0x40] sm:$0xff] 0.0
    %24 = vst [vmem:[#allocation2 + $0x48] sm:$0xff] 0.0
    %25 = vst [vmem:[#allocation2 + $0x50] sm:$0xff] 0.0
    %26 = vst [vmem:[#allocation2 + $0x58] sm:$0xff] 0.0
    %27 = vst [vmem:[#allocation2 + $0x60] sm:$0xff] 0.0
    %28 = vst [vmem:[#allocation2 + $0x68] sm:$0xff] 0.0
    %29 = vst [vmem:[#allocation2 + $0x70] sm:$0xff] 0.0
    %30 = vst [vmem:[#allocation2 + $0x78] sm:$0xff] 0.0
    %31 = vst [vmem:[#allocation2 + $0x80] sm:$0xff] 0.0
    %32 = vst [vmem:[#allocation2 + $0x88] sm:$0xff] 0.0
    %33 = vst [vmem:[#allocation2 + $0x90] sm:$0xff] 0.0
    %34 = vst [vmem:[#allocation2 + $0x98] sm:$0xff] 0.0
    %35 = vst [vmem:[#allocation2 + $0xa0] sm:$0xff] 0.0
    %36 = vst [vmem:[#allocation2 + $0xa8] sm:$0xff] 0.0
    %37 = vst [vmem:[#allocation2 + $0xb0] sm:$0xff] 0.0
    %38 = vst [vmem:[#allocation2 + $0xb8] sm:$0xff] 0.0
    %39 = vst [vmem:[#allocation2 + $0xc0] sm:$0xff] 0.0
    %40 = vst [vmem:[#allocation2 + $0xc8] sm:$0xff] 0.0
    %41 = vst [vmem:[#allocation2 + $0xd0] sm:$0xff] 0.0
    %42 = vst [vmem:[#allocation2 + $0xd8] sm:$0xff] 0.0
    %43 = vst [vmem:[#allocation2 + $0xe0] sm:$0xff] 0.0
    %44 = vst [vmem:[#allocation2 + $0xe8] sm:$0xff] 0.0
    %45 = vst [vmem:[#allocation2 + $0xf0] sm:$0xff] 0.0
    %46 = vst [vmem:[#allocation2 + $0xf8] sm:$0xff] 0.0
    %47 = vst [vmem:[#allocation2 + $0x100] sm:$0xff] 0.0
    %48 = vst [vmem:[#allocation2 + $0x108] sm:$0xff] 0.0
    %49 = vst [vmem:[#allocation2 + $0x110] sm:$0xff] 0.0
    %50 = vst [vmem:[#allocation2 + $0x118] sm:$0xff] 0.0
    %51 = vst [vmem:[#allocation2 + $0x120] sm:$0xff] 0.0
    %52 = vst [vmem:[#allocation2 + $0x128] sm:$0xff] 0.0
    %53 = vst [vmem:[#allocation2 + $0x130] sm:$0xff] 0.0
    %54 = vst [vmem:[#allocation2 + $0x138] sm:$0xff] 0.0
    %55 = vst [vmem:[#allocation2 + $0x140] sm:$0xff] 0.0
    %56 = vst [vmem:[#allocation2 + $0x148] sm:$0xff] 0.0
    %57 = vst [vmem:[#allocation2 + $0x150] sm:$0xff] 0.0
    %58 = vst [vmem:[#allocation2 + $0x158] sm:$0xff] 0.0
    %59 = vst [vmem:[#allocation2 + $0x160] sm:$0xff] 0.0
    %60 = vst [vmem:[#allocation2 + $0x168] sm:$0xff] 0.0
    %61 = vst [vmem:[#allocation2 + $0x170] sm:$0xff] 0.0
    %62 = vst [vmem:[#allocation2 + $0x178] sm:$0xff] 0.0
  $region13: #{encoder_forward.2} parent=0 // pred_fallthru
    _
  %v63 = vld [vmem:[#allocation2] sm:$0xff]
  %v64 = vld [vmem:[#allocation2 + $0x8] sm:$0xff]
  %v65 = vld [vmem:[#allocation2 + $0x10] sm:$0xff]
  %v66 = vld [vmem:[#allocation2 + $0x18] sm:$0xff]
  %v67 = vld [vmem:[#allocation2 + $0x20] sm:$0xff]
  %v68 = vld [vmem:[#allocation2 + $0x28] sm:$0xff]
  %v69 = vld [vmem:[#allocation2 + $0x30] sm:$0xff]
  %v70 = vld [vmem:[#allocation2 + $0x38] sm:$0xff]
  %v71 = vld [vmem:[#allocation2 + $0x40] sm:$0xff]
  %v72 = vld [vmem:[#allocation2 + $0x48] sm:$0xff]
  %v73 = vld [vmem:[#allocation2 + $0x50] sm:$0xff]
  %v74 = vld [vmem:[#allocation2 + $0x58] sm:$0xff]
  %v75 = vld [vmem:[#allocation2 + $0x60] sm:$0xff]
  %v76 = vld [vmem:[#allocation2 + $0x68] sm:$0xff]
  %v77 = vld [vmem:[#allocation2 + $0x70] sm:$0xff]
  %v78 = vld [vmem:[#allocation2 + $0x78] sm:$0xff]
  %v79 = vld [vmem:[#allocation2 + $0x80] sm:$0xff]
  %v80 = vld [vmem:[#allocation2 + $0x88] sm:$0xff]
  %v81 = vld [vmem:[#allocation2 + $0x90] sm:$0xff]
  %v82 = vld [vmem:[#allocation2 + $0x98] sm:$0xff]
  %v83 = vld [vmem:[#allocation2 + $0xa0] sm:$0xff]
  %v84 = vld [vmem:[#allocation2 + $0xa8] sm:$0xff]
  %v85 = vld [vmem:[#allocation2 + $0xb0] sm:$0xff]
  %v86 = vld [vmem:[#allocation2 + $0xb8] sm:$0xff]
  %v87 = vld [vmem:[#allocation2 + $0xc0] sm:$0xff]
  %v88 = vld [vmem:[#allocation2 + $0xc8] sm:$0xff]
  %v89 = vld [vmem:[#allocation2 + $0xd0] sm:$0xff]
  %v90 = vld [vmem:[#allocation2 + $0xd8] sm:$0xff]
  %v91 = vld [vmem:[#allocation2 + $0xe0] sm:$0xff]
  %v92 = vld [vmem:[#allocation2 + $0xe8] sm:$0xff]
  %v93 = vld [vmem:[#allocation2 + $0xf0] sm:$0xff]
  %v94 = vld [vmem:[#allocation2 + $0xf8] sm:$0xff]
  %v95 = vld [vmem:[#allocation2 + $0x100] sm:$0xff]
  %v96 = vld [vmem:[#allocation2 + $0x108] sm:$0xff]
  %v97 = vld [vmem:[#allocation2 + $0x110] sm:$0xff]
  %v98 = vld [vmem:[#allocation2 + $0x118] sm:$0xff]
  %v99 = vld [vmem:[#allocation2 + $0x120] sm:$0xff]
  %v100 = vld [vmem:[#allocation2 + $0x128] sm:$0xff]
  %v101 = vld [vmem:[#allocation2 + $0x130] sm:$0xff]
  %v102 = vld [vmem:[#allocation2 + $0x138] sm:$0xff]
  %v103 = vld [vmem:[#allocation2 + $0x140] sm:$0xff]
  %v104 = vld [vmem:[#allocation2 + $0x148] sm:$0xff]
  %v105 = vld [vmem:[#allocation2 + $0x150] sm:$0xff]
  %v106 = vld [vmem:[#allocation2 + $0x158] sm:$0xff]
  %v107 = vld [vmem:[#allocation2 + $0x160] sm:$0xff]
  %v108 = vld [vmem:[#allocation2 + $0x168] sm:$0xff]
  %v109 = vld [vmem:[#allocation2 + $0x170] sm:$0xff]
  %v110 = vld [vmem:[#allocation2 + $0x178] sm:$0xff]
  %v111 = vld [vmem:[%s0] sm:$0xff]
  %v112 = vld [vmem:[%s0 + $0x8] sm:$0xff]
  %v113 = vld [vmem:[%s0 + $0x10] sm:$0xff]
  %v114 = vld [vmem:[%s0 + $0x18] sm:$0xff]
  %v115 = vld [vmem:[%s0 + $0x20] sm:$0xff]
  %v116 = vld [vmem:[%s0 + $0x28] sm:$0xff]
  %v117 = vld [vmem:[%s0 + $0x30] sm:$0xff]
  %v118 = vld [vmem:[%s0 + $0x38] sm:$0xff]
  %v119 = vld [vmem:[%s0 + $0x40] sm:$0xff]
  %v120 = vld [vmem:[%s0 + $0x48] sm:$0xff]
  %v121 = vld [vmem:[%s0 + $0x50] sm:$0xff]
  %v122 = vld [vmem:[%s0 + $0x58] sm:$0xff]
  %v123 = vld [vmem:[%s0 + $0x60] sm:$0xff]
  %v124 = vld [vmem:[%s0 + $0x68] sm:$0xff]
  %v125 = vld [vmem:[%s0 + $0x70] sm:$0xff]
  %v126 = vld [vmem:[%s0 + $0x78] sm:$0xff]
  %v127 = vld [vmem:[%s0 + $0x80] sm:$0xff]
  %v128 = vld [vmem:[%s0 + $0x88] sm:$0xff]
  %v129 = vld [vmem:[%s0 + $0x90] sm:$0xff]
  %v130 = vld [vmem:[%s0 + $0x98] sm:$0xff]
  %v131 = vld [vmem:[%s0 + $0xa0] sm:$0xff]
  %v132 = vld [vmem:[%s0 + $0xa8] sm:$0xff]
  %v133 = vld [vmem:[%s0 + $0xb0] sm:$0xff]
  %v134 = vld [vmem:[%s0 + $0xb8] sm:$0xff]
  %v135 = vld [vmem:[%s0 + $0xc0] sm:$0xff]
  %v136 = vld [vmem:[%s0 + $0xc8] sm:$0xff]
  %v137 = vld [vmem:[%s0 + $0xd0] sm:$0xff]
  %v138 = vld [vmem:[%s0 + $0xd8] sm:$0xff]
  %v139 = vld [vmem:[%s0 + $0xe0] sm:$0xff]
  %v140 = vld [vmem:[%s0 + $0xe8] sm:$0xff]
  %v141 = vld [vmem:[%s0 + $0xf0] sm:$0xff]
  %v142 = vld [vmem:[%s0 + $0xf8] sm:$0xff]
  %v143 = vld [vmem:[%s0 + $0x100] sm:$0xff]
  %v144 = vld [vmem:[%s0 + $0x108] sm:$0xff]
  %v145 = vld [vmem:[%s0 + $0x110] sm:$0xff]
  %v146 = vld [vmem:[%s0 + $0x118] sm:$0xff]
  %v147 = vld [vmem:[%s0 + $0x120] sm:$0xff]
  %v148 = vld [vmem:[%s0 + $0x128] sm:$0xff]
  %v149 = vld [vmem:[%s0 + $0x130] sm:$0xff]
  %v150 = vld [vmem:[%s0 + $0x138] sm:$0xff]
  %v151 = vld [vmem:[%s0 + $0x140] sm:$0xff]
  %v152 = vld [vmem:[%s0 + $0x148] sm:$0xff]
  %v153 = vld [vmem:[%s0 + $0x150] sm:$0xff]
  %v154 = vld [vmem:[%s0 + $0x158] sm:$0xff]
  %v155 = vld [vmem:[%s0 + $0x160] sm:$0xff]
  %v156 = vld [vmem:[%s0 + $0x168] sm:$0xff]
  %v157 = vld [vmem:[%s0 + $0x170] sm:$0xff]
  %v158 = vld [vmem:[%s0 + $0x178] sm:$0xff]
  %v159 = vld [vmem:[%s0 + $0x180] sm:$0xff]
  %v160 = vld [vmem:[%s0 + $0x188] sm:$0xff]
  %v161 = vld [vmem:[%s0 + $0x190] sm:$0xff]
  %v162 = vld [vmem:[%s0 + $0x198] sm:$0xff]
  %v163 = vld [vmem:[%s0 + $0x1a0] sm:$0xff]
  %v164 = vld [vmem:[%s0 + $0x1a8] sm:$0xff]
  %v165 = vld [vmem:[%s0 + $0x1b0] sm:$0xff]
  %v166 = vld [vmem:[%s0 + $0x1b8] sm:$0xff]
  %v167 = vld [vmem:[%s0 + $0x1c0] sm:$0xff]
  %v168 = vld [vmem:[%s0 + $0x1c8] sm:$0xff]
  %v169 = vld [vmem:[%s0 + $0x1d0] sm:$0xff]
  %v170 = vld [vmem:[%s0 + $0x1d8] sm:$0xff]
  %v171 = vld [vmem:[%s0 + $0x1e0] sm:$0xff]
  %v172 = vld [vmem:[%s0 + $0x1e8] sm:$0xff]
  %v173 = vld [vmem:[%s0 + $0x1f0] sm:$0xff]
  %v174 = vld [vmem:[%s0 + $0x1f8] sm:$0xff]
  %v175 = vld [vmem:[%s0 + $0x200] sm:$0xff]
  %v176 = vld [vmem:[%s0 + $0x208] sm:$0xff]
  %v177 = vld [vmem:[%s0 + $0x210] sm:$0xff]
  %v178 = vld [vmem:[%s0 + $0x218] sm:$0xff]
  %v179 = vld [vmem:[%s0 + $0x220] sm:$0xff]
  %v180 = vld [vmem:[%s0 + $0x228] sm:$0xff]
  %v181 = vld [vmem:[%s0 + $0x230] sm:$0xff]
  %v182 = vld [vmem:[%s0 + $0x238] sm:$0xff]
  %v183 = vld [vmem:[%s0 + $0x240] sm:$0xff]
  %v184 = vld [vmem:[%s0 + $0x248] sm:$0xff]
  %v185 = vld [vmem:[%s0 + $0x250] sm:$0xff]
  %v186 = vld [vmem:[%s0 + $0x258] sm:$0xff]
  %v187 = vld [vmem:[%s0 + $0x260] sm:$0xff]
  %v188 = vld [vmem:[%s0 + $0x268] sm:$0xff]
  %v189 = vld [vmem:[%s0 + $0x270] sm:$0xff]
  %v190 = vld [vmem:[%s0 + $0x278] sm:$0xff]
  %v191 = vld [vmem:[%s0 + $0x280] sm:$0xff]
  %v192 = vld [vmem:[%s0 + $0x288] sm:$0xff]
  %v193 = vld [vmem:[%s0 + $0x290] sm:$0xff]
  %v194 = vld [vmem:[%s0 + $0x298] sm:$0xff]
  %v195 = vld [vmem:[%s0 + $0x2a0] sm:$0xff]
  %v196 = vld [vmem:[%s0 + $0x2a8] sm:$0xff]
  %v197 = vld [vmem:[%s0 + $0x2b0] sm:$0xff]
  %v198 = vld [vmem:[%s0 + $0x2b8] sm:$0xff]
  %v199 = vld [vmem:[%s0 + $0x2c0] sm:$0xff]
  %v200 = vld [vmem:[%s0 + $0x2c8] sm:$0xff]
  %v201 = vld [vmem:[%s0 + $0x2d0] sm:$0xff]
  %v202 = vld [vmem:[%s0 + $0x2d8] sm:$0xff]
  %v203 = vld [vmem:[%s0 + $0x2e0] sm:$0xff]
  %v204 = vld [vmem:[%s0 + $0x2e8] sm:$0xff]
  %v205 = vld [vmem:[%s0 + $0x2f0] sm:$0xff]
  %v206 = vld [vmem:[%s0 + $0x2f8] sm:$0xff]
  %v207 = vld [vmem:[%s1] sm:$0xff]
  %v208 = vld [vmem:[%s1 + $0x8] sm:$0xff]
  %v209 = vld [vmem:[%s1 + $0x10] sm:$0xff]
  %v210 = vld [vmem:[%s1 + $0x18] sm:$0xff]
  %v211 = vld [vmem:[%s1 + $0x20] sm:$0xff]
  %v212 = vld [vmem:[%s1 + $0x28] sm:$0xff]
  %v213 = vld [vmem:[%s1 + $0x30] sm:$0xff]
  %v214 = vld [vmem:[%s1 + $0x38] sm:$0xff]
  %v215 = vld [vmem:[%s1 + $0x40] sm:$0xff]
  %v216 = vld [vmem:[%s1 + $0x48] sm:$0xff]
  %v217 = vld [vmem:[%s1 + $0x50] sm:$0xff]
  %v218 = vld [vmem:[%s1 + $0x58] sm:$0xff]
  %v219 = vld [vmem:[%s1 + $0x60] sm:$0xff]
  %v220 = vld [vmem:[%s1 + $0x68] sm:$0xff]
  %v221 = vld [vmem:[%s1 + $0x70] sm:$0xff]
  %v222 = vld [vmem:[%s1 + $0x78] sm:$0xff]
  %v223 = vld [vmem:[%s1 + $0x80] sm:$0xff]
  %v224 = vld [vmem:[%s1 + $0x88] sm:$0xff]
  %v225 = vld [vmem:[%s1 + $0x90] sm:$0xff]
  %v226 = vld [vmem:[%s1 + $0x98] sm:$0xff]
  %v227 = vld [vmem:[%s1 + $0xa0] sm:$0xff]
  %v228 = vld [vmem:[%s1 + $0xa8] sm:$0xff]
  %v229 = vld [vmem:[%s1 + $0xb0] sm:$0xff]
  %v230 = vld [vmem:[%s1 + $0xb8] sm:$0xff]
  %v231 = vld [vmem:[%s1 + $0xc0] sm:$0xff]
  %v232 = vld [vmem:[%s1 + $0xc8] sm:$0xff]
  %v233 = vld [vmem:[%s1 + $0xd0] sm:$0xff]
  %v234 = vld [vmem:[%s1 + $0xd8] sm:$0xff]
  %v235 = vld [vmem:[%s1 + $0xe0] sm:$0xff]
  %v236 = vld [vmem:[%s1 + $0xe8] sm:$0xff]
  %v237 = vld [vmem:[%s1 + $0xf0] sm:$0xff]
  %v238 = vld [vmem:[%s1 + $0xf8] sm:$0xff]
  %239 = vmatprep.subr.mxu0 0.0
  %240 = vmatpush1.msra.mxu0 %v207
  %241 = vmatprep.subr.mxu0 0.0
  %242 = vmatpush1.msra.mxu0 %v208
  %243 = vmatprep.subr.mxu0 0.0
  %244 = vmatpush1.msra.mxu0 %v209
  %245 = vmatprep.subr.mxu0 0.0
  %246 = vmatpush1.msra.mxu0 %v210
  %247 = vmatprep.subr.mxu0 0.0
  %248 = vmatpush1.msra.mxu0 %v211
  %249 = vmatprep.subr.mxu0 0.0
  %250 = vmatpush1.msra.mxu0 %v212
  %251 = vmatprep.subr.mxu0 0.0
  %252 = vmatpush1.msra.mxu0 %v213
  %253 = vmatprep.subr.mxu0 0.0
  %254 = vmatpush1.msra.mxu0 %v214
  %255 = vmatprep.subr.mxu0 0.0
  %256 = vmatpush1.msra.mxu0 %v215
  %257 = vmatprep.subr.mxu0 0.0
  %258 = vmatpush1.msra.mxu0 %v216
  %259 = vmatprep.subr.mxu0 0.0
  %260 = vmatpush1.msra.mxu0 %v217
  %261 = vmatprep.subr.mxu0 0.0
  %262 = vmatpush1.msra.mxu0 %v218
  %263 = vmatprep.subr.mxu0 0.0
  %264 = vmatpush1.msra.mxu0 %v219
  %265 = vmatprep.subr.mxu0 0.0
  %266 = vmatpush1.msra.mxu0 %v220
  %267 = vmatprep.subr.mxu0 0.0
  %268 = vmatpush1.msra.mxu0 %v221
  %269 = vmatprep.subr.mxu0 0.0
  %270 = vmatpush1.msra.mxu0 %v222
  %271 = vmatprep.subr.mxu0 0.0
  %272 = vmatpush1.msra.mxu0 %v223
  %273 = vmatprep.subr.mxu0 0.0
  %274 = vmatpush1.msra.mxu0 %v224
  %275 = vmatprep.subr.mxu0 0.0
  %276 = vmatpush1.msra.mxu0 %v225
  %277 = vmatprep.subr.mxu0 0.0
  %278 = vmatpush1.msra.mxu0 %v226
  %279 = vmatprep.subr.mxu0 0.0
  %280 = vmatpush1.msra.mxu0 %v227
  %281 = vmatprep.subr.mxu0 0.0
  %282 = vmatpush1.msra.mxu0 %v228
  %283 = vmatprep.subr.mxu0 0.0
  %284 = vmatpush1.msra.mxu0 %v229
  %285 = vmatprep.subr.mxu0 0.0
  %286 = vmatpush1.msra.mxu0 %v230
  %287 = vmatprep.subr.mxu0 0.0
  %288 = vmatpush1.msra.mxu0 %v231
  %289 = vmatprep.subr.mxu0 0.0
  %290 = vmatpush1.msra.mxu0 %v232
  %291 = vmatprep.subr.mxu0 0.0
  %292 = vmatpush1.msra.mxu0 %v233
  %293 = vmatprep.subr.mxu0 0.0
  %294 = vmatpush1.msra.mxu0 %v234
  %295 = vmatprep.subr.mxu0 0.0
  %296 = vmatpush1.msra.mxu0 %v235
  %297 = vmatprep.subr.mxu0 0.0
  %298 = vmatpush1.msra.mxu0 %v236
  %299 = vmatprep.subr.mxu0 0.0
  %300 = vmatpush1.msra.mxu0 %v237
  %301 = vmatprep.subr.mxu0 0.0
  %302 = vmatpush1.msra.mxu0 %v238
  %303 = vmatprep.mubr.f32.mxu0 %v112
  %304 = vmatmul.mubr.f32.gmra.mrb[0].mxu0 %v111
  %v305 = vpop.f32.mrb[0].mxu0
  %v306 = vadd.f32 0.0, %v305
  %v307 = vpop.f32.mrb[0].mxu0
  %308 = vmatprep.mubr.f32.mxu0 %v114
  %309 = vmatmul.mubr.f32.gmra.mrb[0].mxu0 %v113
  %v310 = vpop.f32.mrb[0].mxu0
  %v311 = vadd.f32 0.0, %v310
  %v312 = vpop.f32.mrb[0].mxu0
  %313 = vmatprep.mubr.f32.mxu0 %v116
  %314 = vmatmul.mubr.f32.gmra.mrb[0].mxu0 %v115
  %v315 = vpop.f32.mrb[0].mxu0
  %v316 = vadd.f32 0.0, %v315
  %v317 = vpop.f32.mrb[0].mxu0
  %318 = vmatprep.mubr.f32.mxu0 %v118
  %319 = vmatmul.mubr.f32.gmra.mrb[0].mxu0 %v117
  %v320 = vpop.f32.mrb[0].mxu0
  %v321 = vadd.f32 0.0, %v320
  %v322 = vpop.f32.mrb[0].mxu0
  %323 = vmatprep.mubr.f32.mxu0 %v120
  %324 = vmatmul.mubr.f32.gmra.mrb[0].mxu0 %v119
  %v325 = vpop.f32.mrb[0].mxu0
  %v326 = vadd.f32 0.0, %v325
  %v327 = vpop.f32.mrb[0].mxu0
  %328 = vmatprep.mubr.f32.mxu0 %v122
  %329 = vmatmul.mubr.f32.gmra.mrb[0].mxu0 %v121
  %v330 = vpop.f32.mrb[0].mxu0
  %v331 = vadd.f32 0.0, %v330
  %v332 = vpop.f32.mrb[0].mxu0
  %333 = vmatprep.mubr.f32.mxu0 %v124
  %334 = vmatmul.mubr.f32.gmra.mrb[0].mxu0 %v123
  %v335 = vpop.f32.mrb[0].mxu0
  %v336 = vadd.f32 0.0, %v335
  %v337 = vpop.f32.mrb[0].mxu0
  %338 = vmatprep.mubr.f32.mxu0 %v126
  %339 = vmatmul.mubr.f32.gmra.mrb[0].mxu0 %v125
  %v340 = vpop.f32.mrb[0].mxu0
  %v341 = vadd.f32 0.0, %v340
  %v342 = vpop.f32.mrb[0].mxu0
  %343 = vmatprep.mubr.f32.mxu0 %v128
  %344 = vmatmul.mubr.f32.gmra.mrb[0].mxu0 %v127
  %v345 = vpop.f32.mrb[0].mxu0
  %v346 = vadd.f32 0.0, %v345
  %v347 = vpop.f32.mrb[0].mxu0
  %348 = vmatprep.mubr.f32.mxu0 %v130
  %349 = vmatmul.mubr.f32.gmra.mrb[0].mxu0 %v129
  %v350 = vpop.f32.mrb[0].mxu0
  %v351 = vadd.f32 0.0, %v350
  %v352 = vpop.f32.mrb[0].mxu0
  %353 = vmatprep.mubr.f32.mxu0 %v132
  %354 = vmatmul.mubr.f32.gmra.mrb[0].mxu0 %v131
  %v355 = vpop.f32.mrb[0].mxu0
  %v356 = vadd.f32 0.0, %v355
  %v357 = vpop.f32.mrb[0].mxu0
  %358 = vmatprep.mubr.f32.mxu0 %v134
  %359 = vmatmul.mubr.f32.gmra.mrb[0].mxu0 %v133
  %v360 = vpop.f32.mrb[0].mxu0
  %v361 = vadd.f32 0.0, %v360
  %v362 = vpop.f32.mrb[0].mxu0
  %363 = vmatprep.mubr.f32.mxu0 %v136
  %364 = vmatmul.mubr.f32.gmra.mrb[0].mxu0 %v135
  %v365 = vpop.f32.mrb[0].mxu0
  %v366 = vadd.f32 0.0, %v365
  %v367 = vpop.f32.mrb[0].mxu0
  %368 = vmatprep.mubr.f32.mxu0 %v138
  %369 = vmatmul.mubr.f32.gmra.mrb[0].mxu0 %v137
  %v370 = vpop.f32.mrb[0].mxu0
  %v371 = vadd.f32 0.0, %v370
  %v372 = vpop.f32.mrb[0].mxu0
  %373 = vmatprep.mubr.f32.mxu0 %v140
  %374 = vmatmul.mubr.f32.gmra.mrb[0].mxu0 %v139
  %v375 = vpop.f32.mrb[0].mxu0
  %v376 = vadd.f32 0.0, %v375
  %v377 = vpop.f32.mrb[0].mxu0
  %378 = vmatprep.mubr.f32.mxu0 %v142
  %379 = vmatmul.mubr.f32.gmra.mrb[0].mxu0 %v141
  %v380 = vpop.f32.mrb[0].mxu0
  %v381 = vadd.f32 0.0, %v380
  %v382 = vpop.f32.mrb[0].mxu0
  %383 = vmatprep.mubr.f32.mxu0 %v144
  %384 = vmatmul.mubr.f32.gmra.mrb[0].mxu0 %v143
  %v385 = vpop.f32.mrb[0].mxu0
  %v386 = vadd.f32 0.0, %v385
  %v387 = vpop.f32.mrb[0].mxu0
  %388 = vmatprep.mubr.f32.mxu0 %v146
  %389 = vmatmul.mubr.f32.gmra.mrb[0].mxu0 %v145
  %v390 = vpop.f32.mrb[0].mxu0
  %v391 = vadd.f32 0.0, %v390
  %v392 = vpop.f32.mrb[0].mxu0
  %393 = vmatprep.mubr.f32.mxu0 %v148
  %394 = vmatmul.mubr.f32.gmra.mrb[0].mxu0 %v147
  %v395 = vpop.f32.mrb[0].mxu0
  %v396 = vadd.f32 0.0, %v395
  %v397 = vpop.f32.mrb[0].mxu0
  %398 = vmatprep.mubr.f32.mxu0 %v150
  %399 = vmatmul.mubr.f32.gmra.mrb[0].mxu0 %v149
  %v400 = vpop.f32.mrb[0].mxu0
  %v401 = vadd.f32 0.0, %v400
  %v402 = vpop.f32.mrb[0].mxu0
  %403 = vmatprep.mubr.f32.mxu0 %v152
  %404 = vmatmul.mubr.f32.gmra.mrb[0].mxu0 %v151
  %v405 = vpop.f32.mrb[0].mxu0
  %v406 = vadd.f32 0.0, %v405
  %v407 = vpop.f32.mrb[0].mxu0
  %408 = vmatprep.mubr.f32.mxu0 %v154
  %409 = vmatmul.mubr.f32.gmra.mrb[0].mxu0 %v153
  %v410 = vpop.f32.mrb[0].mxu0
  %v411 = vadd.f32 0.0, %v410
  %v412 = vpop.f32.mrb[0].mxu0
  %413 = vmatprep.mubr.f32.mxu0 %v156
  %414 = vmatmul.mubr.f32.gmra.mrb[0].mxu0 %v155
  %v415 = vpop.f32.mrb[0].mxu0
  %v416 = vadd.f32 0.0, %v415
  %v417 = vpop.f32.mrb[0].mxu0
  %418 = vmatprep.mubr.f32.mxu0 %v158
  %419 = vmatmul.mubr.f32.gmra.mrb[0].mxu0 %v157
  %v420 = vpop.f32.mrb[0].mxu0
  %v421 = vadd.f32 0.0, %v420
  %v422 = vpop.f32.mrb[0].mxu0
  %423 = vmatprep.mubr.f32.mxu0 %v160
  %424 = vmatmul.mubr.f32.gmra.mrb[0].mxu0 %v159
  %v425 = vpop.f32.mrb[0].mxu0
  %v426 = vadd.f32 0.0, %v425
  %v427 = vpop.f32.mrb[0].mxu0
  %428 = vmatprep.mubr.f32.mxu0 %v162
  %429 = vmatmul.mubr.f32.gmra.mrb[0].mxu0 %v161
  %v430 = vpop.f32.mrb[0].mxu0
  %v431 = vadd.f32 0.0, %v430
  %v432 = vpop.f32.mrb[0].mxu0
  %433 = vmatprep.mubr.f32.mxu0 %v164
  %434 = vmatmul.mubr.f32.gmra.mrb[0].mxu0 %v163
  %v435 = vpop.f32.mrb[0].mxu0
  %v436 = vadd.f32 0.0, %v435
  %v437 = vpop.f32.mrb[0].mxu0
  %438 = vmatprep.mubr.f32.mxu0 %v166
  %439 = vmatmul.mubr.f32.gmra.mrb[0].mxu0 %v165
  %v440 = vpop.f32.mrb[0].mxu0
  %v441 = vadd.f32 0.0, %v440
  %v442 = vpop.f32.mrb[0].mxu0
  %443 = vmatprep.mubr.f32.mxu0 %v168
  %444 = vmatmul.mubr.f32.gmra.mrb[0].mxu0 %v167
  %v445 = vpop.f32.mrb[0].mxu0
  %v446 = vadd.f32 0.0, %v445
  %v447 = vpop.f32.mrb[0].mxu0
  %448 = vmatprep.mubr.f32.mxu0 %v170
  %449 = vmatmul.mubr.f32.gmra.mrb[0].mxu0 %v169
  %v450 = vpop.f32.mrb[0].mxu0
  %v451 = vadd.f32 0.0, %v450
  %v452 = vpop.f32.mrb[0].mxu0
  %453 = vmatprep.mubr.f32.mxu0 %v172
  %454 = vmatmul.mubr.f32.gmra.mrb[0].mxu0 %v171
  %v455 = vpop.f32.mrb[0].mxu0
  %v456 = vadd.f32 0.0, %v455
  %v457 = vpop.f32.mrb[0].mxu0
  %458 = vmatprep.mubr.f32.mxu0 %v174
  %459 = vmatmul.mubr.f32.gmra.mrb[0].mxu0 %v173
  %v460 = vpop.f32.mrb[0].mxu0
  %v461 = vadd.f32 0.0, %v460
  %v462 = vpop.f32.mrb[0].mxu0
  %463 = vmatprep.mubr.f32.mxu0 %v176
  %464 = vmatmul.mubr.f32.gmra.mrb[0].mxu0 %v175
  %v465 = vpop.f32.mrb[0].mxu0
  %v466 = vadd.f32 0.0, %v465
  %v467 = vpop.f32.mrb[0].mxu0
  %468 = vmatprep.mubr.f32.mxu0 %v178
  %469 = vmatmul.mubr.f32.gmra.mrb[0].mxu0 %v177
  %v470 = vpop.f32.mrb[0].mxu0
  %v471 = vadd.f32 0.0, %v470
  %v472 = vpop.f32.mrb[0].mxu0
  %473 = vmatprep.mubr.f32.mxu0 %v180
  %474 = vmatmul.mubr.f32.gmra.mrb[0].mxu0 %v179
  %v475 = vpop.f32.mrb[0].mxu0
  %v476 = vadd.f32 0.0, %v475
  %v477 = vpop.f32.mrb[0].mxu0
  %478 = vmatprep.mubr.f32.mxu0 %v182
  %479 = vmatmul.mubr.f32.gmra.mrb[0].mxu0 %v181
  %v480 = vpop.f32.mrb[0].mxu0
  %v481 = vadd.f32 0.0, %v480
  %v482 = vpop.f32.mrb[0].mxu0
  %483 = vmatprep.mubr.f32.mxu0 %v184
  %484 = vmatmul.mubr.f32.gmra.mrb[0].mxu0 %v183
  %v485 = vpop.f32.mrb[0].mxu0
  %v486 = vadd.f32 0.0, %v485
  %v487 = vpop.f32.mrb[0].mxu0
  %488 = vmatprep.mubr.f32.mxu0 %v186
  %489 = vmatmul.mubr.f32.gmra.mrb[0].mxu0 %v185
  %v490 = vpop.f32.mrb[0].mxu0
  %v491 = vadd.f32 0.0, %v490
  %v492 = vpop.f32.mrb[0].mxu0
  %493 = vmatprep.mubr.f32.mxu0 %v188
  %494 = vmatmul.mubr.f32.gmra.mrb[0].mxu0 %v187
  %v495 = vpop.f32.mrb[0].mxu0
  %v496 = vadd.f32 0.0, %v495
  %v497 = vpop.f32.mrb[0].mxu0
  %498 = vmatprep.mubr.f32.mxu0 %v190
  %499 = vmatmul.mubr.f32.gmra.mrb[0].mxu0 %v189
  %v500 = vpop.f32.mrb[0].mxu0
  %v501 = vadd.f32 0.0, %v500
  %v502 = vpop.f32.mrb[0].mxu0
  %503 = vmatprep.mubr.f32.mxu0 %v192
  %504 = vmatmul.mubr.f32.gmra.mrb[0].mxu0 %v191
  %v505 = vpop.f32.mrb[0].mxu0
  %v506 = vadd.f32 0.0, %v505
  %v507 = vpop.f32.mrb[0].mxu0
  %508 = vmatprep.mubr.f32.mxu0 %v194
  %509 = vmatmul.mubr.f32.gmra.mrb[0].mxu0 %v193
  %v510 = vpop.f32.mrb[0].mxu0
  %v511 = vadd.f32 0.0, %v510
  %v512 = vpop.f32.mrb[0].mxu0
  %513 = vmatprep.mubr.f32.mxu0 %v196
  %514 = vmatmul.mubr.f32.gmra.mrb[0].mxu0 %v195
  %v515 = vpop.f32.mrb[0].mxu0
  %v516 = vadd.f32 0.0, %v515
  %v517 = vpop.f32.mrb[0].mxu0
  %518 = vmatprep.mubr.f32.mxu0 %v198
  %519 = vmatmul.mubr.f32.gmra.mrb[0].mxu0 %v197
  %v520 = vpop.f32.mrb[0].mxu0
  %v521 = vadd.f32 0.0, %v520
  %v522 = vpop.f32.mrb[0].mxu0
  %523 = vmatprep.mubr.f32.mxu0 %v200
  %524 = vmatmul.mubr.f32.gmra.mrb[0].mxu0 %v199
  %v525 = vpop.f32.mrb[0].mxu0
  %v526 = vadd.f32 0.0, %v525
  %v527 = vpop.f32.mrb[0].mxu0
  %528 = vmatprep.mubr.f32.mxu0 %v202
  %529 = vmatmul.mubr.f32.gmra.mrb[0].mxu0 %v201
  %v530 = vpop.f32.mrb[0].mxu0
  %v531 = vadd.f32 0.0, %v530
  %v532 = vpop.f32.mrb[0].mxu0
  %533 = vmatprep.mubr.f32.mxu0 %v204
  %534 = vmatmul.mubr.f32.gmra.mrb[0].mxu0 %v203
  %v535 = vpop.f32.mrb[0].mxu0
  %v536 = vadd.f32 0.0, %v535
  %v537 = vpop.f32.mrb[0].mxu0
  %538 = vmatprep.mubr.f32.mxu0 %v206
  %539 = vmatmul.mubr.f32.gmra.mrb[0].mxu0 %v205
  %v540 = vpop.f32.mrb[0].mxu0
  %v541 = vadd.f32 0.0, %v540
  %v542 = vpop.f32.mrb[0].mxu0
  %543 = vdwg.mxu0
  %v544 = vadd.f32 %v63, %v306
  %v545 = vadd.f32 %v64, %v311
  %v546 = vadd.f32 %v65, %v316
  %v547 = vadd.f32 %v66, %v321
  %v548 = vadd.f32 %v67, %v326
  %v549 = vadd.f32 %v68, %v331
  %v550 = vadd.f32 %v69, %v336
  %v551 = vadd.f32 %v70, %v341
  %v552 = vadd.f32 %v71, %v346
  %v553 = vadd.f32 %v72, %v351
  %v554 = vadd.f32 %v73, %v356
  %v555 = vadd.f32 %v74, %v361
  %v556 = vadd.f32 %v75, %v366
  %v557 = vadd.f32 %v76, %v371
  %v558 = vadd.f32 %v77, %v376
  %v559 = vadd.f32 %v78, %v381
  %v560 = vadd.f32 %v79, %v386
  %v561 = vadd.f32 %v80, %v391
  %v562 = vadd.f32 %v81, %v396
  %v563 = vadd.f32 %v82, %v401
  %v564 = vadd.f32 %v83, %v406
  %v565 = vadd.f32 %v84, %v411
  %v566 = vadd.f32 %v85, %v416
  %v567 = vadd.f32 %v86, %v421
  %v568 = vadd.f32 %v87, %v426
  %v569 = vadd.f32 %v88, %v431
  %v570 = vadd.f32 %v89, %v436
  %v571 = vadd.f32 %v90, %v441
  %v572 = vadd.f32 %v91, %v446
  %v573 = vadd.f32 %v92, %v451
  %v574 = vadd.f32 %v93, %v456
  %v575 = vadd.f32 %v94, %v461
  %v576 = vadd.f32 %v95, %v466
  %v577 = vadd.f32 %v96, %v471
  %v578 = vadd.f32 %v97, %v476
  %v579 = vadd.f32 %v98, %v481
  %v580 = vadd.f32 %v99, %v486
  %v581 = vadd.f32 %v100, %v491
  %v582 = vadd.f32 %v101, %v496
  %v583 = vadd.f32 %v102, %v501
  %v584 = vadd.f32 %v103, %v506
  %v585 = vadd.f32 %v104, %v511
  %v586 = vadd.f32 %v105, %v516
  %v587 = vadd.f32 %v106, %v521
  %v588 = vadd.f32 %v107, %v526
  %v589 = vadd.f32 %v108, %v531
  %v590 = vadd.f32 %v109, %v536
  %v591 = vadd.f32 %v110, %v541
  %592 = vst [vmem:[#allocation2] sm:$0xff] %v544
  %593 = vst [vmem:[#allocation2 + $0x8] sm:$0xff] %v545
  %594 = vst [vmem:[#allocation2 + $0x10] sm:$0xff] %v546
  %595 = vst [vmem:[#allocation2 + $0x18] sm:$0xff] %v547
  %596 = vst [vmem:[#allocation2 + $0x20] sm:$0xff] %v548
  %597 = vst [vmem:[#allocation2 + $0x28] sm:$0xff] %v549
  %598 = vst [vmem:[#allocation2 + $0x30] sm:$0xff] %v550
  %599 = vst [vmem:[#allocation2 + $0x38] sm:$0xff] %v551
  %600 = vst [vmem:[#allocation2 + $0x40] sm:$0xff] %v552
  %601 = vst [vmem:[#allocation2 + $0x48] sm:$0xff] %v553
  %602 = vst [vmem:[#allocation2 + $0x50] sm:$0xff] %v554
  %603 = vst [vmem:[#allocation2 + $0x58] sm:$0xff] %v555
  %604 = vst [vmem:[#allocation2 + $0x60] sm:$0xff] %v556
  %605 = vst [vmem:[#allocation2 + $0x68] sm:$0xff] %v557
  %606 = vst [vmem:[#allocation2 + $0x70] sm:$0xff] %v558
  %607 = vst [vmem:[#allocation2 + $0x78] sm:$0xff] %v559
  %608 = vst [vmem:[#allocation2 + $0x80] sm:$0xff] %v560
  %609 = vst [vmem:[#allocation2 + $0x88] sm:$0xff] %v561
  %610 = vst [vmem:[#allocation2 + $0x90] sm:$0xff] %v562
  %611 = vst [vmem:[#allocation2 + $0x98] sm:$0xff] %v563
  %612 = vst [vmem:[#allocation2 + $0xa0] sm:$0xff] %v564
  %613 = vst [vmem:[#allocation2 + $0xa8] sm:$0xff] %v565
  %614 = vst [vmem:[#allocation2 + $0xb0] sm:$0xff] %v566
  %615 = vst [vmem:[#allocation2 + $0xb8] sm:$0xff] %v567
  %616 = vst [vmem:[#allocation2 + $0xc0] sm:$0xff] %v568
  %617 = vst [vmem:[#allocation2 + $0xc8] sm:$0xff] %v569
  %618 = vst [vmem:[#allocation2 + $0xd0] sm:$0xff] %v570
  %619 = vst [vmem:[#allocation2 + $0xd8] sm:$0xff] %v571
  %620 = vst [vmem:[#allocation2 + $0xe0] sm:$0xff] %v572
  %621 = vst [vmem:[#allocation2 + $0xe8] sm:$0xff] %v573
  %622 = vst [vmem:[#allocation2 + $0xf0] sm:$0xff] %v574
  %623 = vst [vmem:[#allocation2 + $0xf8] sm:$0xff] %v575
  %624 = vst [vmem:[#allocation2 + $0x100] sm:$0xff] %v576
  %625 = vst [vmem:[#allocation2 + $0x108] sm:$0xff] %v577
  %626 = vst [vmem:[#allocation2 + $0x110] sm:$0xff] %v578
  %627 = vst [vmem:[#allocation2 + $0x118] sm:$0xff] %v579
  %628 = vst [vmem:[#allocation2 + $0x120] sm:$0xff] %v580
  %629 = vst [vmem:[#allocation2 + $0x128] sm:$0xff] %v581
  %630 = vst [vmem:[#allocation2 + $0x130] sm:$0xff] %v582
  %631 = vst [vmem:[#allocation2 + $0x138] sm:$0xff] %v583
  %632 = vst [vmem:[#allocation2 + $0x140] sm:$0xff] %v584
  %633 = vst [vmem:[#allocation2 + $0x148] sm:$0xff] %v585
  %634 = vst [vmem:[#allocation2 + $0x150] sm:$0xff] %v586
  %635 = vst [vmem:[#allocation2 + $0x158] sm:$0xff] %v587
  %636 = vst [vmem:[#allocation2 + $0x160] sm:$0xff] %v588
  %637 = vst [vmem:[#allocation2 + $0x168] sm:$0xff] %v589
  %638 = vst [vmem:[#allocation2 + $0x170] sm:$0xff] %v590
  %639 = vst [vmem:[#allocation2 + $0x178] sm:$0xff] %v591
  // Predicated region
  $region14: #{encoder_forward.2} parent=0 // pred_check
    %p640 = pneg %p11
  $region15: #{encoder_forward.2} parent=0 // pred_check_branch
    %642 = sbr.rel (%p640) target = $region17
  $region16: #{encoder_forward.2} parent=0 // pred_region
    %v643 = vld [vmem:[#allocation2] sm:$0xff]
    %v644 = vld [vmem:[#allocation2 + $0x8] sm:$0xff]
    %v645 = vld [vmem:[#allocation2 + $0x10] sm:$0xff]
    %v646 = vld [vmem:[#allocation2 + $0x18] sm:$0xff]
    %v647 = vld [vmem:[#allocation2 + $0x20] sm:$0xff]
    %v648 = vld [vmem:[#allocation2 + $0x28] sm:$0xff]
    %v649 = vld [vmem:[#allocation2 + $0x30] sm:$0xff]
    %v650 = vld [vmem:[#allocation2 + $0x38] sm:$0xff]
    %v651 = vld [vmem:[#allocation2 + $0x40] sm:$0xff]
    %v652 = vld [vmem:[#allocation2 + $0x48] sm:$0xff]
    %v653 = vld [vmem:[#allocation2 + $0x50] sm:$0xff]
    %v654 = vld [vmem:[#allocation2 + $0x58] sm:$0xff]
    %v655 = vld [vmem:[#allocation2 + $0x60] sm:$0xff]
    %v656 = vld [vmem:[#allocation2 + $0x68] sm:$0xff]
    %v657 = vld [vmem:[#allocation2 + $0x70] sm:$0xff]
    %v658 = vld [vmem:[#allocation2 + $0x78] sm:$0xff]
    %v659 = vld [vmem:[#allocation2 + $0x80] sm:$0xff]
    %v660 = vld [vmem:[#allocation2 + $0x88] sm:$0xff]
    %v661 = vld [vmem:[#allocation2 + $0x90] sm:$0xff]
    %v662 = vld [vmem:[#allocation2 + $0x98] sm:$0xff]
    %v663 = vld [vmem:[#allocation2 + $0xa0] sm:$0xff]
    %v664 = vld [vmem:[#allocation2 + $0xa8] sm:$0xff]
    %v665 = vld [vmem:[#allocation2 + $0xb0] sm:$0xff]
    %v666 = vld [vmem:[#allocation2 + $0xb8] sm:$0xff]
    %v667 = vld [vmem:[#allocation2 + $0xc0] sm:$0xff]
    %v668 = vld [vmem:[#allocation2 + $0xc8] sm:$0xff]
    %v669 = vld [vmem:[#allocation2 + $0xd0] sm:$0xff]
    %v670 = vld [vmem:[#allocation2 + $0xd8] sm:$0xff]
    %v671 = vld [vmem:[#allocation2 + $0xe0] sm:$0xff]
    %v672 = vld [vmem:[#allocation2 + $0xe8] sm:$0xff]
    %v673 = vld [vmem:[#allocation2 + $0xf0] sm:$0xff]
    %v674 = vld [vmem:[#allocation2 + $0xf8] sm:$0xff]
    %v675 = vld [vmem:[#allocation2 + $0x100] sm:$0xff]
    %v676 = vld [vmem:[#allocation2 + $0x108] sm:$0xff]
    %v677 = vld [vmem:[#allocation2 + $0x110] sm:$0xff]
    %v678 = vld [vmem:[#allocation2 + $0x118] sm:$0xff]
    %v679 = vld [vmem:[#allocation2 + $0x120] sm:$0xff]
    %v680 = vld [vmem:[#allocation2 + $0x128] sm:$0xff]
    %v681 = vld [vmem:[#allocation2 + $0x130] sm:$0xff]
    %v682 = vld [vmem:[#allocation2 + $0x138] sm:$0xff]
    %v683 = vld [vmem:[#allocation2 + $0x140] sm:$0xff]
    %v684 = vld [vmem:[#allocation2 + $0x148] sm:$0xff]
    %v685 = vld [vmem:[#allocation2 + $0x150] sm:$0xff]
    %v686 = vld [vmem:[#allocation2 + $0x158] sm:$0xff]
    %v687 = vld [vmem:[#allocation2 + $0x160] sm:$0xff]
    %v688 = vld [vmem:[#allocation2 + $0x168] sm:$0xff]
    %v689 = vld [vmem:[#allocation2 + $0x170] sm:$0xff]
    %v690 = vld [vmem:[#allocation2 + $0x178] sm:$0xff]
    %691 = vst [vmem:[%s2] sm:$0xff] %v643
    %692 = vst [vmem:[%s2 + $0x8] sm:$0xff] %v644
    %693 = vst [vmem:[%s2 + $0x10] sm:$0xff] %v645
    %694 = vst [vmem:[%s2 + $0x18] sm:$0xff] %v646
    %695 = vst [vmem:[%s2 + $0x20] sm:$0xff] %v647
    %696 = vst [vmem:[%s2 + $0x28] sm:$0xff] %v648
    %697 = vst [vmem:[%s2 + $0x30] sm:$0xff] %v649
    %698 = vst [vmem:[%s2 + $0x38] sm:$0xff] %v650
    %699 = vst [vmem:[%s2 + $0x40] sm:$0xff] %v651
    %700 = vst [vmem:[%s2 + $0x48] sm:$0xff] %v652
    %701 = vst [vmem:[%s2 + $0x50] sm:$0xff] %v653
    %702 = vst [vmem:[%s2 + $0x58] sm:$0xff] %v654
    %703 = vst [vmem:[%s2 + $0x60] sm:$0xff] %v655
    %704 = vst [vmem:[%s2 + $0x68] sm:$0xff] %v656
    %705 = vst [vmem:[%s2 + $0x70] sm:$0xff] %v657
    %706 = vst [vmem:[%s2 + $0x78] sm:$0xff] %v658
    %707 = vst [vmem:[%s2 + $0x80] sm:$0xff] %v659
    %708 = vst [vmem:[%s2 + $0x88] sm:$0xff] %v660
    %709 = vst [vmem:[%s2 + $0x90] sm:$0xff] %v661
    %710 = vst [vmem:[%s2 + $0x98] sm:$0xff] %v662
    %711 = vst [vmem:[%s2 + $0xa0] sm:$0xff] %v663
    %712 = vst [vmem:[%s2 + $0xa8] sm:$0xff] %v664
    %713 = vst [vmem:[%s2 + $0xb0] sm:$0xff] %v665
    %714 = vst [vmem:[%s2 + $0xb8] sm:$0xff] %v666
    %715 = vst [vmem:[%s2 + $0xc0] sm:$0xff] %v667
    %716 = vst [vmem:[%s2 + $0xc8] sm:$0xff] %v668
    %717 = vst [vmem:[%s2 + $0xd0] sm:$0xff] %v669
    %718 = vst [vmem:[%s2 + $0xd8] sm:$0xff] %v670
    %719 = vst [vmem:[%s2 + $0xe0] sm:$0xff] %v671
    %720 = vst [vmem:[%s2 + $0xe8] sm:$0xff] %v672
    %721 = vst [vmem:[%s2 + $0xf0] sm:$0xff] %v673
    %722 = vst [vmem:[%s2 + $0xf8] sm:$0xff] %v674
    %723 = vst [vmem:[%s2 + $0x100] sm:$0xff] %v675
    %724 = vst [vmem:[%s2 + $0x108] sm:$0xff] %v676
    %725 = vst [vmem:[%s2 + $0x110] sm:$0xff] %v677
    %726 = vst [vmem:[%s2 + $0x118] sm:$0xff] %v678
    %727 = vst [vmem:[%s2 + $0x120] sm:$0xff] %v679
    %728 = vst [vmem:[%s2 + $0x128] sm:$0xff] %v680
    %729 = vst [vmem:[%s2 + $0x130] sm:$0xff] %v681
    %730 = vst [vmem:[%s2 + $0x138] sm:$0xff] %v682
    %731 = vst [vmem:[%s2 + $0x140] sm:$0xff] %v683
    %732 = vst [vmem:[%s2 + $0x148] sm:$0xff] %v684
    %733 = vst [vmem:[%s2 + $0x150] sm:$0xff] %v685
    %734 = vst [vmem:[%s2 + $0x158] sm:$0xff] %v686
    %735 = vst [vmem:[%s2 + $0x160] sm:$0xff] %v687
    %736 = vst [vmem:[%s2 + $0x168] sm:$0xff] %v688
    %737 = vst [vmem:[%s2 + $0x170] sm:$0xff] %v689
    %738 = vst [vmem:[%s2 + $0x178] sm:$0xff] %v690
  $region17: #{encoder_forward.2} parent=0 // pred_fallthru
    _
  // Predicated region
  $region18: #{encoder_forward.2} parent=0 // pred_check
    _
  $region19: #{encoder_forward.2} parent=0 // pred_check_branch
    %740 = sbr.rel (0) target = $region21
  $region20: #{encoder_forward.2} parent=0 // pred_region
    _
  $region21: #{encoder_forward.2} parent=0 // pred_fallthru
    _
  // Predicated region
  $region22: #{encoder_forward.2} parent=0 // pred_check
    _
  $region23: #{encoder_forward.2} parent=0 // pred_check_branch
    %742 = sbr.rel (0) target = $region25
  $region24: #{encoder_forward.2} parent=0 // pred_region
    _
  $region25: #{encoder_forward.2} parent=0 // pred_fallthru
    _

// kernel: encoder_forward.3
$region0: #{encoder_forward.3}
  #allocation0 [shape = 'u32[]', space=smem, size = 0x4, offset = 0x4, fixed_abs, tag = 'smem constant byte address 0x4 - core index']
  #allocation1 [shape = 'u32[144,128]{1,0:T(1,128)}', space=vmem, size = 0x12000, scoped, tag = 'internal scratch']
  #allocation2 [shape = 'f32[384,128]{1,0:T(8,128)}', space=vmem, size = 0x30000, scoped, tag = 'scratch operand']
  %s0 = inlined_call_operand.vmem [shape: bf16[384,384], index: 0, kind: input, shape index: {}]
  %s1 = inlined_call_operand.vmem [shape: bf16[384,128], index: 1, kind: input, shape index: {}]
  %s2 = inlined_call_operand.vmem [shape: f32[384,128], index: 2, kind: output, shape index: {}]
  %s3 = sld [smem:[#allocation0]]
  $region26: #{encoder_forward.3} parent=0
    _
  %s5 = ssub.s32 1, %s3
  %s6 = scalar_select 0, %s5, %s3
  // Predicated region
  $region2: #{encoder_forward.3} parent=0 // pred_check
    _
  $region3: #{encoder_forward.3} parent=0 // pred_check_branch
    %8 = sbr.rel (0) target = $region5
  $region4: #{encoder_forward.3} parent=0 // pred_region
    _
  $region5: #{encoder_forward.3} parent=0 // pred_fallthru
    _
  // Predicated region
  $region6: #{encoder_forward.3} parent=0 // pred_check
    _
  $region7: #{encoder_forward.3} parent=0 // pred_check_branch
    %10 = sbr.rel (0) target = $region9
  $region8: #{encoder_forward.3} parent=0 // pred_region
    _
  $region9: #{encoder_forward.3} parent=0 // pred_fallthru
    _
  %p12 = scmp.eq.s32.totalorder 0, 0
  // Predicated region
  $region10: #{encoder_forward.3} parent=0 // pred_check
    %p13 = pneg %p12
  $region11: #{encoder_forward.3} parent=0 // pred_check_branch
    %15 = sbr.rel (%p13) target = $region13
  $region12: #{encoder_forward.3} parent=0 // pred_region
    %16 = vst [vmem:[#allocation2] sm:$0xff] 0.0
    %17 = vst [vmem:[#allocation2 + $0x8] sm:$0xff] 0.0
    %18 = vst [vmem:[#allocation2 + $0x10] sm:$0xff] 0.0
    %19 = vst [vmem:[#allocation2 + $0x18] sm:$0xff] 0.0
    %20 = vst [vmem:[#allocation2 + $0x20] sm:$0xff] 0.0
    %21 = vst [vmem:[#allocation2 + $0x28] sm:$0xff] 0.0
    %22 = vst [vmem:[#allocation2 + $0x30] sm:$0xff] 0.0
    %23 = vst [vmem:[#allocation2 + $0x38] sm:$0xff] 0.0
    %24 = vst [vmem:[#allocation2 + $0x40] sm:$0xff] 0.0
    %25 = vst [vmem:[#allocation2 + $0x48] sm:$0xff] 0.0
    %26 = vst [vmem:[#allocation2 + $0x50] sm:$0xff] 0.0
    %27 = vst [vmem:[#allocation2 + $0x58] sm:$0xff] 0.0
    %28 = vst [vmem:[#allocation2 + $0x60] sm:$0xff] 0.0
    %29 = vst [vmem:[#allocation2 + $0x68] sm:$0xff] 0.0
    %30 = vst [vmem:[#allocation2 + $0x70] sm:$0xff] 0.0
    %31 = vst [vmem:[#allocation2 + $0x78] sm:$0xff] 0.0
    %32 = vst [vmem:[#allocation2 + $0x80] sm:$0xff] 0.0
    %33 = vst [vmem:[#allocation2 + $0x88] sm:$0xff] 0.0
    %34 = vst [vmem:[#allocation2 + $0x90] sm:$0xff] 0.0
    %35 = vst [vmem:[#allocation2 + $0x98] sm:$0xff] 0.0
    %36 = vst [vmem:[#allocation2 + $0xa0] sm:$0xff] 0.0
    %37 = vst [vmem:[#allocation2 + $0xa8] sm:$0xff] 0.0
    %38 = vst [vmem:[#allocation2 + $0xb0] sm:$0xff] 0.0
    %39 = vst [vmem:[#allocation2 + $0xb8] sm:$0xff] 0.0
    %40 = vst [vmem:[#allocation2 + $0xc0] sm:$0xff] 0.0
    %41 = vst [vmem:[#allocation2 + $0xc8] sm:$0xff] 0.0
    %42 = vst [vmem:[#allocation2 + $0xd0] sm:$0xff] 0.0
    %43 = vst [vmem:[#allocation2 + $0xd8] sm:$0xff] 0.0
    %44 = vst [vmem:[#allocation2 + $0xe0] sm:$0xff] 0.0
    %45 = vst [vmem:[#allocation2 + $0xe8] sm:$0xff] 0.0
    %46 = vst [vmem:[#allocation2 + $0xf0] sm:$0xff] 0.0
    %47 = vst [vmem:[#allocation2 + $0xf8] sm:$0xff] 0.0
    %48 = vst [vmem:[#allocation2 + $0x100] sm:$0xff] 0.0
    %49 = vst [vmem:[#allocation2 + $0x108] sm:$0xff] 0.0
    %50 = vst [vmem:[#allocation2 + $0x110] sm:$0xff] 0.0
    %51 = vst [vmem:[#allocation2 + $0x118] sm:$0xff] 0.0
    %52 = vst [vmem:[#allocation2 + $0x120] sm:$0xff] 0.0
    %53 = vst [vmem:[#allocation2 + $0x128] sm:$0xff] 0.0
    %54 = vst [vmem:[#allocation2 + $0x130] sm:$0xff] 0.0
    %55 = vst [vmem:[#allocation2 + $0x138] sm:$0xff] 0.0
    %56 = vst [vmem:[#allocation2 + $0x140] sm:$0xff] 0.0
    %57 = vst [vmem:[#allocation2 + $0x148] sm:$0xff] 0.0
    %58 = vst [vmem:[#allocation2 + $0x150] sm:$0xff] 0.0
    %59 = vst [vmem:[#allocation2 + $0x158] sm:$0xff] 0.0
    %60 = vst [vmem:[#allocation2 + $0x160] sm:$0xff] 0.0
    %61 = vst [vmem:[#allocation2 + $0x168] sm:$0xff] 0.0
    %62 = vst [vmem:[#allocation2 + $0x170] sm:$0xff] 0.0
    %63 = vst [vmem:[#allocation2 + $0x178] sm:$0xff] 0.0
  $region13: #{encoder_forward.3} parent=0 // pred_fallthru
    _
  %v64 = vld [vmem:[#allocation2] sm:$0xff]
  %v65 = vld [vmem:[#allocation2 + $0x8] sm:$0xff]
  %v66 = vld [vmem:[#allocation2 + $0x10] sm:$0xff]
  %v67 = vld [vmem:[#allocation2 + $0x18] sm:$0xff]
  %v68 = vld [vmem:[#allocation2 + $0x20] sm:$0xff]
  %v69 = vld [vmem:[#allocation2 + $0x28] sm:$0xff]
  %v70 = vld [vmem:[#allocation2 + $0x30] sm:$0xff]
  %v71 = vld [vmem:[#allocation2 + $0x38] sm:$0xff]
  %v72 = vld [vmem:[#allocation2 + $0x40] sm:$0xff]
  %v73 = vld [vmem:[#allocation2 + $0x48] sm:$0xff]
  %v74 = vld [vmem:[#allocation2 + $0x50] sm:$0xff]
  %v75 = vld [vmem:[#allocation2 + $0x58] sm:$0xff]
  %v76 = vld [vmem:[#allocation2 + $0x60] sm:$0xff]
  %v77 = vld [vmem:[#allocation2 + $0x68] sm:$0xff]
  %v78 = vld [vmem:[#allocation2 + $0x70] sm:$0xff]
  %v79 = vld [vmem:[#allocation2 + $0x78] sm:$0xff]
  %v80 = vld [vmem:[#allocation2 + $0x80] sm:$0xff]
  %v81 = vld [vmem:[#allocation2 + $0x88] sm:$0xff]
  %v82 = vld [vmem:[#allocation2 + $0x90] sm:$0xff]
  %v83 = vld [vmem:[#allocation2 + $0x98] sm:$0xff]
  %v84 = vld [vmem:[#allocation2 + $0xa0] sm:$0xff]
  %v85 = vld [vmem:[#allocation2 + $0xa8] sm:$0xff]
  %v86 = vld [vmem:[#allocation2 + $0xb0] sm:$0xff]
  %v87 = vld [vmem:[#allocation2 + $0xb8] sm:$0xff]
  %v88 = vld [vmem:[#allocation2 + $0xc0] sm:$0xff]
  %v89 = vld [vmem:[#allocation2 + $0xc8] sm:$0xff]
  %v90 = vld [vmem:[#allocation2 + $0xd0] sm:$0xff]
  %v91 = vld [vmem:[#allocation2 + $0xd8] sm:$0xff]
  %v92 = vld [vmem:[#allocation2 + $0xe0] sm:$0xff]
  %v93 = vld [vmem:[#allocation2 + $0xe8] sm:$0xff]
  %v94 = vld [vmem:[#allocation2 + $0xf0] sm:$0xff]
  %v95 = vld [vmem:[#allocation2 + $0xf8] sm:$0xff]
  %v96 = vld [vmem:[#allocation2 + $0x100] sm:$0xff]
  %v97 = vld [vmem:[#allocation2 + $0x108] sm:$0xff]
  %v98 = vld [vmem:[#allocation2 + $0x110] sm:$0xff]
  %v99 = vld [vmem:[#allocation2 + $0x118] sm:$0xff]
  %v100 = vld [vmem:[#allocation2 + $0x120] sm:$0xff]
  %v101 = vld [vmem:[#allocation2 + $0x128] sm:$0xff]
  %v102 = vld [vmem:[#allocation2 + $0x130] sm:$0xff]
  %v103 = vld [vmem:[#allocation2 + $0x138] sm:$0xff]
  %v104 = vld [vmem:[#allocation2 + $0x140] sm:$0xff]
  %v105 = vld [vmem:[#allocation2 + $0x148] sm:$0xff]
  %v106 = vld [vmem:[#allocation2 + $0x150] sm:$0xff]
  %v107 = vld [vmem:[#allocation2 + $0x158] sm:$0xff]
  %v108 = vld [vmem:[#allocation2 + $0x160] sm:$0xff]
  %v109 = vld [vmem:[#allocation2 + $0x168] sm:$0xff]
  %v110 = vld [vmem:[#allocation2 + $0x170] sm:$0xff]
  %v111 = vld [vmem:[#allocation2 + $0x178] sm:$0xff]
  %v112 = vld [vmem:[%s0] sm:$0xff]
  %v113 = vld [vmem:[%s0 + $0x8] sm:$0xf]
  %v114 = vld [vmem:[%s0 + $0xc] sm:$0xff]
  %v115 = vld [vmem:[%s0 + $0x14] sm:$0xf]
  %v116 = vld [vmem:[%s0 + $0x18] sm:$0xff]
  %v117 = vld [vmem:[%s0 + $0x20] sm:$0xf]
  %v118 = vld [vmem:[%s0 + $0x24] sm:$0xff]
  %v119 = vld [vmem:[%s0 + $0x2c] sm:$0xf]
  %v120 = vld [vmem:[%s0 + $0x30] sm:$0xff]
  %v121 = vld [vmem:[%s0 + $0x38] sm:$0xf]
  %v122 = vld [vmem:[%s0 + $0x3c] sm:$0xff]
  %v123 = vld [vmem:[%s0 + $0x44] sm:$0xf]
  %v124 = vld [vmem:[%s0 + $0x48] sm:$0xff]
  %v125 = vld [vmem:[%s0 + $0x50] sm:$0xf]
  %v126 = vld [vmem:[%s0 + $0x54] sm:$0xff]
  %v127 = vld [vmem:[%s0 + $0x5c] sm:$0xf]
  %v128 = vld [vmem:[%s0 + $0x60] sm:$0xff]
  %v129 = vld [vmem:[%s0 + $0x68] sm:$0xf]
  %v130 = vld [vmem:[%s0 + $0x6c] sm:$0xff]
  %v131 = vld [vmem:[%s0 + $0x74] sm:$0xf]
  %v132 = vld [vmem:[%s0 + $0x78] sm:$0xff]
  %v133 = vld [vmem:[%s0 + $0x80] sm:$0xf]
  %v134 = vld [vmem:[%s0 + $0x84] sm:$0xff]
  %v135 = vld [vmem:[%s0 + $0x8c] sm:$0xf]
  %v136 = vld [vmem:[%s0 + $0x90] sm:$0xff]
  %v137 = vld [vmem:[%s0 + $0x98] sm:$0xf]
  %v138 = vld [vmem:[%s0 + $0x9c] sm:$0xff]
  %v139 = vld [vmem:[%s0 + $0xa4] sm:$0xf]
  %v140 = vld [vmem:[%s0 + $0xa8] sm:$0xff]
  %v141 = vld [vmem:[%s0 + $0xb0] sm:$0xf]
  %v142 = vld [vmem:[%s0 + $0xb4] sm:$0xff]
  %v143 = vld [vmem:[%s0 + $0xbc] sm:$0xf]
  %v144 = vld [vmem:[%s0 + $0xc0] sm:$0xff]
  %v145 = vld [vmem:[%s0 + $0xc8] sm:$0xf]
  %v146 = vld [vmem:[%s0 + $0xcc] sm:$0xff]
  %v147 = vld [vmem:[%s0 + $0xd4] sm:$0xf]
  %v148 = vld [vmem:[%s0 + $0xd8] sm:$0xff]
  %v149 = vld [vmem:[%s0 + $0xe0] sm:$0xf]
  %v150 = vld [vmem:[%s0 + $0xe4] sm:$0xff]
  %v151 = vld [vmem:[%s0 + $0xec] sm:$0xf]
  %v152 = vld [vmem:[%s0 + $0xf0] sm:$0xff]
  %v153 = vld [vmem:[%s0 + $0xf8] sm:$0xf]
  %v154 = vld [vmem:[%s0 + $0xfc] sm:$0xff]
  %v155 = vld [vmem:[%s0 + $0x104] sm:$0xf]
  %v156 = vld [vmem:[%s0 + $0x108] sm:$0xff]
  %v157 = vld [vmem:[%s0 + $0x110] sm:$0xf]
  %v158 = vld [vmem:[%s0 + $0x114] sm:$0xff]
  %v159 = vld [vmem:[%s0 + $0x11c] sm:$0xf]
  %v160 = vld [vmem:[%s0 + $0x120] sm:$0xff]
  %v161 = vld [vmem:[%s0 + $0x128] sm:$0xf]
  %v162 = vld [vmem:[%s0 + $0x12c] sm:$0xff]
  %v163 = vld [vmem:[%s0 + $0x134] sm:$0xf]
  %v164 = vld [vmem:[%s0 + $0x138] sm:$0xff]
  %v165 = vld [vmem:[%s0 + $0x140] sm:$0xf]
  %v166 = vld [vmem:[%s0 + $0x144] sm:$0xff]
  %v167 = vld [vmem:[%s0 + $0x14c] sm:$0xf]
  %v168 = vld [vmem:[%s0 + $0x150] sm:$0xff]
  %v169 = vld [vmem:[%s0 + $0x158] sm:$0xf]
  %v170 = vld [vmem:[%s0 + $0x15c] sm:$0xff]
  %v171 = vld [vmem:[%s0 + $0x164] sm:$0xf]
  %v172 = vld [vmem:[%s0 + $0x168] sm:$0xff]
  %v173 = vld [vmem:[%s0 + $0x170] sm:$0xf]
  %v174 = vld [vmem:[%s0 + $0x174] sm:$0xff]
  %v175 = vld [vmem:[%s0 + $0x17c] sm:$0xf]
  %v176 = vld [vmem:[%s0 + $0x180] sm:$0xff]
  %v177 = vld [vmem:[%s0 + $0x188] sm:$0xf]
  %v178 = vld [vmem:[%s0 + $0x18c] sm:$0xff]
  %v179 = vld [vmem:[%s0 + $0x194] sm:$0xf]
  %v180 = vld [vmem:[%s0 + $0x198] sm:$0xff]
  %v181 = vld [vmem:[%s0 + $0x1a0] sm:$0xf]
  %v182 = vld [vmem:[%s0 + $0x1a4] sm:$0xff]
  %v183 = vld [vmem:[%s0 + $0x1ac] sm:$0xf]
  %v184 = vld [vmem:[%s0 + $0x1b0] sm:$0xff]
  %v185 = vld [vmem:[%s0 + $0x1b8] sm:$0xf]
  %v186 = vld [vmem:[%s0 + $0x1bc] sm:$0xff]
  %v187 = vld [vmem:[%s0 + $0x1c4] sm:$0xf]
  %v188 = vld [vmem:[%s0 + $0x1c8] sm:$0xff]
  %v189 = vld [vmem:[%s0 + $0x1d0] sm:$0xf]
  %v190 = vld [vmem:[%s0 + $0x1d4] sm:$0xff]
  %v191 = vld [vmem:[%s0 + $0x1dc] sm:$0xf]
  %v192 = vld [vmem:[%s0 + $0x1e0] sm:$0xff]
  %v193 = vld [vmem:[%s0 + $0x1e8] sm:$0xf]
  %v194 = vld [vmem:[%s0 + $0x1ec] sm:$0xff]
  %v195 = vld [vmem:[%s0 + $0x1f4] sm:$0xf]
  %v196 = vld [vmem:[%s0 + $0x1f8] sm:$0xff]
  %v197 = vld [vmem:[%s0 + $0x200] sm:$0xf]
  %v198 = vld [vmem:[%s0 + $0x204] sm:$0xff]
  %v199 = vld [vmem:[%s0 + $0x20c] sm:$0xf]
  %v200 = vld [vmem:[%s0 + $0x210] sm:$0xff]
  %v201 = vld [vmem:[%s0 + $0x218] sm:$0xf]
  %v202 = vld [vmem:[%s0 + $0x21c] sm:$0xff]
  %v203 = vld [vmem:[%s0 + $0x224] sm:$0xf]
  %v204 = vld [vmem:[%s0 + $0x228] sm:$0xff]
  %v205 = vld [vmem:[%s0 + $0x230] sm:$0xf]
  %v206 = vld [vmem:[%s0 + $0x234] sm:$0xff]
  %v207 = vld [vmem:[%s0 + $0x23c] sm:$0xf]
  %v208 = vld [vmem:[%s1] sm:$0xf]
  %v209 = vld [vmem:[%s1 + $0x4] sm:$0xf]
  %v210 = vld [vmem:[%s1 + $0x8] sm:$0xf]
  %v211 = vld [vmem:[%s1 + $0xc] sm:$0xf]
  %v212 = vld [vmem:[%s1 + $0x10] sm:$0xf]
  %v213 = vld [vmem:[%s1 + $0x14] sm:$0xf]
  %v214 = vld [vmem:[%s1 + $0x18] sm:$0xf]
  %v215 = vld [vmem:[%s1 + $0x1c] sm:$0xf]
  %v216 = vld [vmem:[%s1 + $0x20] sm:$0xf]
  %v217 = vld [vmem:[%s1 + $0x24] sm:$0xf]
  %v218 = vld [vmem:[%s1 + $0x28] sm:$0xf]
  %v219 = vld [vmem:[%s1 + $0x2c] sm:$0xf]
  %v220 = vld [vmem:[%s1 + $0x30] sm:$0xf]
  %v221 = vld [vmem:[%s1 + $0x34] sm:$0xf]
  %v222 = vld [vmem:[%s1 + $0x38] sm:$0xf]
  %v223 = vld [vmem:[%s1 + $0x3c] sm:$0xf]
  %v224 = vld [vmem:[%s1 + $0x40] sm:$0xf]
  %v225 = vld [vmem:[%s1 + $0x44] sm:$0xf]
  %v226 = vld [vmem:[%s1 + $0x48] sm:$0xf]
  %v227 = vld [vmem:[%s1 + $0x4c] sm:$0xf]
  %v228 = vld [vmem:[%s1 + $0x50] sm:$0xf]
  %v229 = vld [vmem:[%s1 + $0x54] sm:$0xf]
  %v230 = vld [vmem:[%s1 + $0x58] sm:$0xf]
  %v231 = vld [vmem:[%s1 + $0x5c] sm:$0xf]
  %v232 = vld [vmem:[%s1 + $0x60] sm:$0xf]
  %v233 = vld [vmem:[%s1 + $0x64] sm:$0xf]
  %v234 = vld [vmem:[%s1 + $0x68] sm:$0xf]
  %v235 = vld [vmem:[%s1 + $0x6c] sm:$0xf]
  %v236 = vld [vmem:[%s1 + $0x70] sm:$0xf]
  %v237 = vld [vmem:[%s1 + $0x74] sm:$0xf]
  %v238 = vld [vmem:[%s1 + $0x78] sm:$0xf]
  %v239 = vld [vmem:[%s1 + $0x7c] sm:$0xf]
  %v240 = vld [vmem:[%s1 + $0x80] sm:$0xf]
  %v241 = vld [vmem:[%s1 + $0x84] sm:$0xf]
  %v242 = vld [vmem:[%s1 + $0x88] sm:$0xf]
  %v243 = vld [vmem:[%s1 + $0x8c] sm:$0xf]
  %v244 = vld [vmem:[%s1 + $0x90] sm:$0xf]
  %v245 = vld [vmem:[%s1 + $0x94] sm:$0xf]
  %v246 = vld [vmem:[%s1 + $0x98] sm:$0xf]
  %v247 = vld [vmem:[%s1 + $0x9c] sm:$0xf]
  %v248 = vld [vmem:[%s1 + $0xa0] sm:$0xf]
  %v249 = vld [vmem:[%s1 + $0xa4] sm:$0xf]
  %v250 = vld [vmem:[%s1 + $0xa8] sm:$0xf]
  %v251 = vld [vmem:[%s1 + $0xac] sm:$0xf]
  %v252 = vld [vmem:[%s1 + $0xb0] sm:$0xf]
  %v253 = vld [vmem:[%s1 + $0xb4] sm:$0xf]
  %v254 = vld [vmem:[%s1 + $0xb8] sm:$0xf]
  %v255 = vld [vmem:[%s1 + $0xbc] sm:$0xf]
  %v352 = vunpack.c.l.b16 %v112
  %v353 = vunpack.c.h.b16 %v112
  %v354 = vunpack.c.l.b16 %v113
  %v355 = vunpack.c.l.b16 %v114
  %v356 = vunpack.c.h.b16 %v114
  %v357 = vunpack.c.l.b16 %v115
  %v358 = vunpack.c.l.b16 %v116
  %v359 = vunpack.c.h.b16 %v116
  %v360 = vunpack.c.l.b16 %v117
  %v361 = vunpack.c.l.b16 %v118
  %v362 = vunpack.c.h.b16 %v118
  %v363 = vunpack.c.l.b16 %v119
  %v364 = vunpack.c.l.b16 %v120
  %v365 = vunpack.c.h.b16 %v120
  %v366 = vunpack.c.l.b16 %v121
  %v367 = vunpack.c.l.b16 %v122
  %v368 = vunpack.c.h.b16 %v122
  %v369 = vunpack.c.l.b16 %v123
  %v370 = vunpack.c.l.b16 %v124
  %v371 = vunpack.c.h.b16 %v124
  %v372 = vunpack.c.l.b16 %v125
  %v373 = vunpack.c.l.b16 %v126
  %v374 = vunpack.c.h.b16 %v126
  %v375 = vunpack.c.l.b16 %v127
  %v376 = vunpack.c.l.b16 %v128
  %v377 = vunpack.c.h.b16 %v128
  %v378 = vunpack.c.l.b16 %v129
  %v379 = vunpack.c.l.b16 %v130
  %v380 = vunpack.c.h.b16 %v130
  %v381 = vunpack.c.l.b16 %v131
  %v382 = vunpack.c.l.b16 %v132
  %v383 = vunpack.c.h.b16 %v132
  %v384 = vunpack.c.l.b16 %v133
  %v385 = vunpack.c.l.b16 %v134
  %v386 = vunpack.c.h.b16 %v134
  %v387 = vunpack.c.l.b16 %v135
  %v388 = vunpack.c.l.b16 %v136
  %v389 = vunpack.c.h.b16 %v136
  %v390 = vunpack.c.l.b16 %v137
  %v391 = vunpack.c.l.b16 %v138
  %v392 = vunpack.c.h.b16 %v138
  %v393 = vunpack.c.l.b16 %v139
  %v394 = vunpack.c.l.b16 %v140
  %v395 = vunpack.c.h.b16 %v140
  %v396 = vunpack.c.l.b16 %v141
  %v397 = vunpack.c.l.b16 %v142
  %v398 = vunpack.c.h.b16 %v142
  %v399 = vunpack.c.l.b16 %v143
  %v400 = vunpack.c.l.b16 %v144
  %v401 = vunpack.c.h.b16 %v144
  %v402 = vunpack.c.l.b16 %v145
  %v403 = vunpack.c.l.b16 %v146
  %v404 = vunpack.c.h.b16 %v146
  %v405 = vunpack.c.l.b16 %v147
  %v406 = vunpack.c.l.b16 %v148
  %v407 = vunpack.c.h.b16 %v148
  %v408 = vunpack.c.l.b16 %v149
  %v409 = vunpack.c.l.b16 %v150
  %v410 = vunpack.c.h.b16 %v150
  %v411 = vunpack.c.l.b16 %v151
  %v412 = vunpack.c.l.b16 %v152
  %v413 = vunpack.c.h.b16 %v152
  %v414 = vunpack.c.l.b16 %v153
  %v415 = vunpack.c.l.b16 %v154
  %v416 = vunpack.c.h.b16 %v154
  %v417 = vunpack.c.l.b16 %v155
  %v418 = vunpack.c.l.b16 %v156
  %v419 = vunpack.c.h.b16 %v156
  %v420 = vunpack.c.l.b16 %v157
  %v421 = vunpack.c.l.b16 %v158
  %v422 = vunpack.c.h.b16 %v158
  %v423 = vunpack.c.l.b16 %v159
  %v424 = vunpack.c.l.b16 %v160
  %v425 = vunpack.c.h.b16 %v160
  %v426 = vunpack.c.l.b16 %v161
  %v427 = vunpack.c.l.b16 %v162
  %v428 = vunpack.c.h.b16 %v162
  %v429 = vunpack.c.l.b16 %v163
  %v430 = vunpack.c.l.b16 %v164
  %v431 = vunpack.c.h.b16 %v164
  %v432 = vunpack.c.l.b16 %v165
  %v433 = vunpack.c.l.b16 %v166
  %v434 = vunpack.c.h.b16 %v166
  %v435 = vunpack.c.l.b16 %v167
  %v436 = vunpack.c.l.b16 %v168
  %v437 = vunpack.c.h.b16 %v168
  %v438 = vunpack.c.l.b16 %v169
  %v439 = vunpack.c.l.b16 %v170
  %v440 = vunpack.c.h.b16 %v170
  %v441 = vunpack.c.l.b16 %v171
  %v442 = vunpack.c.l.b16 %v172
  %v443 = vunpack.c.h.b16 %v172
  %v444 = vunpack.c.l.b16 %v173
  %v445 = vunpack.c.l.b16 %v174
  %v446 = vunpack.c.h.b16 %v174
  %v447 = vunpack.c.l.b16 %v175
  %v448 = vunpack.c.l.b16 %v176
  %v449 = vunpack.c.h.b16 %v176
  %v450 = vunpack.c.l.b16 %v177
  %v451 = vunpack.c.l.b16 %v178
  %v452 = vunpack.c.h.b16 %v178
  %v453 = vunpack.c.l.b16 %v179
  %v454 = vunpack.c.l.b16 %v180
  %v455 = vunpack.c.h.b16 %v180
  %v456 = vunpack.c.l.b16 %v181
  %v457 = vunpack.c.l.b16 %v182
  %v458 = vunpack.c.h.b16 %v182
  %v459 = vunpack.c.l.b16 %v183
  %v460 = vunpack.c.l.b16 %v184
  %v461 = vunpack.c.h.b16 %v184
  %v462 = vunpack.c.l.b16 %v185
  %v463 = vunpack.c.l.b16 %v186
  %v464 = vunpack.c.h.b16 %v186
  %v465 = vunpack.c.l.b16 %v187
  %v466 = vunpack.c.l.b16 %v188
  %v467 = vunpack.c.h.b16 %v188
  %v468 = vunpack.c.l.b16 %v189
  %v469 = vunpack.c.l.b16 %v190
  %v470 = vunpack.c.h.b16 %v190
  %v471 = vunpack.c.l.b16 %v191
  %v472 = vunpack.c.l.b16 %v192
  %v473 = vunpack.c.h.b16 %v192
  %v474 = vunpack.c.l.b16 %v193
  %v475 = vunpack.c.l.b16 %v194
  %v476 = vunpack.c.h.b16 %v194
  %v477 = vunpack.c.l.b16 %v195
  %v478 = vunpack.c.l.b16 %v196
  %v479 = vunpack.c.h.b16 %v196
  %v480 = vunpack.c.l.b16 %v197
  %v481 = vunpack.c.l.b16 %v198
  %v482 = vunpack.c.h.b16 %v198
  %v483 = vunpack.c.l.b16 %v199
  %v484 = vunpack.c.l.b16 %v200
  %v485 = vunpack.c.h.b16 %v200
  %v486 = vunpack.c.l.b16 %v201
  %v487 = vunpack.c.l.b16 %v202
  %v488 = vunpack.c.h.b16 %v202
  %v489 = vunpack.c.l.b16 %v203
  %v490 = vunpack.c.l.b16 %v204
  %v491 = vunpack.c.h.b16 %v204
  %v492 = vunpack.c.l.b16 %v205
  %v493 = vunpack.c.l.b16 %v206
  %v494 = vunpack.c.h.b16 %v206
  %v495 = vunpack.c.l.b16 %v207
  %v496 = vpack.c.b16 %v355, %v352
  %v497 = vpack.c.b16 %v356, %v353
  %v498 = vpack.c.b16 %v357, %v354
  %v499 = vpack.c.b16 %v361, %v358
  %v500 = vpack.c.b16 %v362, %v359
  %v501 = vpack.c.b16 %v363, %v360
  %v502 = vpack.c.b16 %v367, %v364
  %v503 = vpack.c.b16 %v368, %v365
  %v504 = vpack.c.b16 %v369, %v366
  %v505 = vpack.c.b16 %v373, %v370
  %v506 = vpack.c.b16 %v374, %v371
  %v507 = vpack.c.b16 %v375, %v372
  %v508 = vpack.c.b16 %v379, %v376
  %v509 = vpack.c.b16 %v380, %v377
  %v510 = vpack.c.b16 %v381, %v378
  %v511 = vpack.c.b16 %v385, %v382
  %v512 = vpack.c.b16 %v386, %v383
  %v513 = vpack.c.b16 %v387, %v384
  %v514 = vpack.c.b16 %v391, %v388
  %v515 = vpack.c.b16 %v392, %v389
  %v516 = vpack.c.b16 %v393, %v390
  %v517 = vpack.c.b16 %v397, %v394
  %v518 = vpack.c.b16 %v398, %v395
  %v519 = vpack.c.b16 %v399, %v396
  %v520 = vpack.c.b16 %v403, %v400
  %v521 = vpack.c.b16 %v404, %v401
  %v522 = vpack.c.b16 %v405, %v402
  %v523 = vpack.c.b16 %v409, %v406
  %v524 = vpack.c.b16 %v410, %v407
  %v525 = vpack.c.b16 %v411, %v408
  %v526 = vpack.c.b16 %v415, %v412
  %v527 = vpack.c.b16 %v416, %v413
  %v528 = vpack.c.b16 %v417, %v414
  %v529 = vpack.c.b16 %v421, %v418
  %v530 = vpack.c.b16 %v422, %v419
  %v531 = vpack.c.b16 %v423, %v420
  %v532 = vpack.c.b16 %v427, %v424
  %v533 = vpack.c.b16 %v428, %v425
  %v534 = vpack.c.b16 %v429, %v426
  %v535 = vpack.c.b16 %v433, %v430
  %v536 = vpack.c.b16 %v434, %v431
  %v537 = vpack.c.b16 %v435, %v432
  %v538 = vpack.c.b16 %v439, %v436
  %v539 = vpack.c.b16 %v440, %v437
  %v540 = vpack.c.b16 %v441, %v438
  %v541 = vpack.c.b16 %v445, %v442
  %v542 = vpack.c.b16 %v446, %v443
  %v543 = vpack.c.b16 %v447, %v444
  %v544 = vpack.c.b16 %v451, %v448
  %v545 = vpack.c.b16 %v452, %v449
  %v546 = vpack.c.b16 %v453, %v450
  %v547 = vpack.c.b16 %v457, %v454
  %v548 = vpack.c.b16 %v458, %v455
  %v549 = vpack.c.b16 %v459, %v456
  %v550 = vpack.c.b16 %v463, %v460
  %v551 = vpack.c.b16 %v464, %v461
  %v552 = vpack.c.b16 %v465, %v462
  %v553 = vpack.c.b16 %v469, %v466
  %v554 = vpack.c.b16 %v470, %v467
  %v555 = vpack.c.b16 %v471, %v468
  %v556 = vpack.c.b16 %v475, %v472
  %v557 = vpack.c.b16 %v476, %v473
  %v558 = vpack.c.b16 %v477, %v474
  %v559 = vpack.c.b16 %v481, %v478
  %v560 = vpack.c.b16 %v482, %v479
  %v561 = vpack.c.b16 %v483, %v480
  %v562 = vpack.c.b16 %v487, %v484
  %v563 = vpack.c.b16 %v488, %v485
  %v564 = vpack.c.b16 %v489, %v486
  %v565 = vpack.c.b16 %v493, %v490
  %v566 = vpack.c.b16 %v494, %v491
  %v567 = vpack.c.b16 %v495, %v492
  %v688 = vunpack.c.l.b16 %v208
  %v689 = vunpack.c.l.b16 %v209
  %v690 = vunpack.c.l.b16 %v210
  %v691 = vunpack.c.l.b16 %v211
  %v692 = vunpack.c.l.b16 %v212
  %v693 = vunpack.c.l.b16 %v213
  %v694 = vunpack.c.l.b16 %v214
  %v695 = vunpack.c.l.b16 %v215
  %v696 = vunpack.c.l.b16 %v216
  %v697 = vunpack.c.l.b16 %v217
  %v698 = vunpack.c.l.b16 %v218
  %v699 = vunpack.c.l.b16 %v219
  %v700 = vunpack.c.l.b16 %v220
  %v701 = vunpack.c.l.b16 %v221
  %v702 = vunpack.c.l.b16 %v222
  %v703 = vunpack.c.l.b16 %v223
  %v704 = vunpack.c.l.b16 %v224
  %v705 = vunpack.c.l.b16 %v225
  %v706 = vunpack.c.l.b16 %v226
  %v707 = vunpack.c.l.b16 %v227
  %v708 = vunpack.c.l.b16 %v228
  %v709 = vunpack.c.l.b16 %v229
  %v710 = vunpack.c.l.b16 %v230
  %v711 = vunpack.c.l.b16 %v231
  %v712 = vunpack.c.l.b16 %v232
  %v713 = vunpack.c.l.b16 %v233
  %v714 = vunpack.c.l.b16 %v234
  %v715 = vunpack.c.l.b16 %v235
  %v716 = vunpack.c.l.b16 %v236
  %v717 = vunpack.c.l.b16 %v237
  %v718 = vunpack.c.l.b16 %v238
  %v719 = vunpack.c.l.b16 %v239
  %v720 = vunpack.c.l.b16 %v240
  %v721 = vunpack.c.l.b16 %v241
  %v722 = vunpack.c.l.b16 %v242
  %v723 = vunpack.c.l.b16 %v243
  %v724 = vunpack.c.l.b16 %v244
  %v725 = vunpack.c.l.b16 %v245
  %v726 = vunpack.c.l.b16 %v246
  %v727 = vunpack.c.l.b16 %v247
  %v728 = vunpack.c.l.b16 %v248
  %v729 = vunpack.c.l.b16 %v249
  %v730 = vunpack.c.l.b16 %v250
  %v731 = vunpack.c.l.b16 %v251
  %v732 = vunpack.c.l.b16 %v252
  %v733 = vunpack.c.l.b16 %v253
  %v734 = vunpack.c.l.b16 %v254
  %v735 = vunpack.c.l.b16 %v255
  %v736 = vpack.c.b16 %v689, %v688
  %v737 = vpack.c.b16 %v691, %v690
  %v738 = vpack.c.b16 %v693, %v692
  %v739 = vpack.c.b16 %v695, %v694
  %v740 = vpack.c.b16 %v697, %v696
  %v741 = vpack.c.b16 %v699, %v698
  %v742 = vpack.c.b16 %v701, %v700
  %v743 = vpack.c.b16 %v703, %v702
  %v744 = vpack.c.b16 %v705, %v704
  %v745 = vpack.c.b16 %v707, %v706
  %v746 = vpack.c.b16 %v709, %v708
  %v747 = vpack.c.b16 %v711, %v710
  %v748 = vpack.c.b16 %v713, %v712
  %v749 = vpack.c.b16 %v715, %v714
  %v750 = vpack.c.b16 %v717, %v716
  %v751 = vpack.c.b16 %v719, %v718
  %v752 = vpack.c.b16 %v721, %v720
  %v753 = vpack.c.b16 %v723, %v722
  %v754 = vpack.c.b16 %v725, %v724
  %v755 = vpack.c.b16 %v727, %v726
  %v756 = vpack.c.b16 %v729, %v728
  %v757 = vpack.c.b16 %v731, %v730
  %v758 = vpack.c.b16 %v733, %v732
  %v759 = vpack.c.b16 %v735, %v734
  %784 = vmatprep.subr.bf16.mxu0 0
  %785 = vmatpush1.bf16.msra.mxu0 %v736
  %786 = vmatprep.subr.bf16.mxu0 0
  %787 = vmatpush1.bf16.msra.mxu0 %v737
  %788 = vmatprep.subr.bf16.mxu0 0
  %789 = vmatpush1.bf16.msra.mxu0 %v738
  %790 = vmatprep.subr.bf16.mxu0 0
  %791 = vmatpush1.bf16.msra.mxu0 %v739
  %792 = vmatprep.subr.bf16.mxu0 0
  %793 = vmatpush1.bf16.msra.mxu0 %v740
  %794 = vmatprep.subr.bf16.mxu0 0
  %795 = vmatpush1.bf16.msra.mxu0 %v741
  %796 = vmatprep.subr.bf16.mxu0 0
  %797 = vmatpush1.bf16.msra.mxu0 %v742
  %798 = vmatprep.subr.bf16.mxu0 0
  %799 = vmatpush1.bf16.msra.mxu0 %v743
  %800 = vmatprep.subr.bf16.mxu0 0
  %801 = vmatpush1.bf16.msra.mxu0 %v744
  %802 = vmatprep.subr.bf16.mxu0 0
  %803 = vmatpush1.bf16.msra.mxu0 %v745
  %804 = vmatprep.subr.bf16.mxu0 0
  %805 = vmatpush1.bf16.msra.mxu0 %v746
  %806 = vmatprep.subr.bf16.mxu0 0
  %807 = vmatpush1.bf16.msra.mxu0 %v747
  %808 = vmatprep.subr.bf16.mxu0 0
  %809 = vmatpush1.bf16.msra.mxu0 %v748
  %810 = vmatprep.subr.bf16.mxu0 0
  %811 = vmatpush1.bf16.msra.mxu0 %v749
  %812 = vmatprep.subr.bf16.mxu0 0
  %813 = vmatpush1.bf16.msra.mxu0 %v750
  %814 = vmatprep.subr.bf16.mxu0 0
  %815 = vmatpush1.bf16.msra.mxu0 %v751
  %816 = vmatprep.mubr.bf16.mxu0 %v497
  %817 = vmatmul.mubr.bf16.gmra.mrb[0].mxu0 %v496
  %v818 = vpop.f32.mrb[0].mxu0
  %v819 = vadd.f32 0.0, %v818
  %v820 = vpop.f32.mrb[0].mxu0
  %v821 = vpop.f32.mrb[0].mxu0
  %v822 = vadd.f32 0.0, %v821
  %v823 = vpop.f32.mrb[0].mxu0
  %824 = vmatprep.mubr.bf16.mxu0 %v500
  %825 = vmatmul.mubr.bf16.gmra.mrb[0].mxu0 %v499
  %v826 = vpop.f32.mrb[0].mxu0
  %v827 = vadd.f32 0.0, %v826
  %v828 = vpop.f32.mrb[0].mxu0
  %v829 = vpop.f32.mrb[0].mxu0
  %v830 = vadd.f32 0.0, %v829
  %v831 = vpop.f32.mrb[0].mxu0
  %832 = vmatprep.mubr.bf16.mxu0 %v503
  %833 = vmatmul.mubr.bf16.gmra.mrb[0].mxu0 %v502
  %v834 = vpop.f32.mrb[0].mxu0
  %v835 = vadd.f32 0.0, %v834
  %v836 = vpop.f32.mrb[0].mxu0
  %v837 = vpop.f32.mrb[0].mxu0
  %v838 = vadd.f32 0.0, %v837
  %v839 = vpop.f32.mrb[0].mxu0
  %840 = vmatprep.mubr.bf16.mxu0 %v506
  %841 = vmatmul.mubr.bf16.gmra.mrb[0].mxu0 %v505
  %v842 = vpop.f32.mrb[0].mxu0
  %v843 = vadd.f32 0.0, %v842
  %v844 = vpop.f32.mrb[0].mxu0
  %v845 = vpop.f32.mrb[0].mxu0
  %v846 = vadd.f32 0.0, %v845
  %v847 = vpop.f32.mrb[0].mxu0
  %848 = vmatprep.mubr.bf16.mxu0 %v509
  %849 = vmatmul.mubr.bf16.gmra.mrb[0].mxu0 %v508
  %v850 = vpop.f32.mrb[0].mxu0
  %v851 = vadd.f32 0.0, %v850
  %v852 = vpop.f32.mrb[0].mxu0
  %v853 = vpop.f32.mrb[0].mxu0
  %v854 = vadd.f32 0.0, %v853
  %v855 = vpop.f32.mrb[0].mxu0
  %856 = vmatprep.mubr.bf16.mxu0 %v512
  %857 = vmatmul.mubr.bf16.gmra.mrb[0].mxu0 %v511
  %v858 = vpop.f32.mrb[0].mxu0
  %v859 = vadd.f32 0.0, %v858
  %v860 = vpop.f32.mrb[0].mxu0
  %v861 = vpop.f32.mrb[0].mxu0
  %v862 = vadd.f32 0.0, %v861
  %v863 = vpop.f32.mrb[0].mxu0
  %864 = vmatprep.mubr.bf16.mxu0 %v515
  %865 = vmatmul.mubr.bf16.gmra.mrb[0].mxu0 %v514
  %v866 = vpop.f32.mrb[0].mxu0
  %v867 = vadd.f32 0.0, %v866
  %v868 = vpop.f32.mrb[0].mxu0
  %v869 = vpop.f32.mrb[0].mxu0
  %v870 = vadd.f32 0.0, %v869
  %v871 = vpop.f32.mrb[0].mxu0
  %872 = vmatprep.mubr.bf16.mxu0 %v518
  %873 = vmatmul.mubr.bf16.gmra.mrb[0].mxu0 %v517
  %v874 = vpop.f32.mrb[0].mxu0
  %v875 = vadd.f32 0.0, %v874
  %v876 = vpop.f32.mrb[0].mxu0
  %v877 = vpop.f32.mrb[0].mxu0
  %v878 = vadd.f32 0.0, %v877
  %v879 = vpop.f32.mrb[0].mxu0
  %880 = vmatprep.mubr.bf16.mxu0 %v521
  %881 = vmatmul.mubr.bf16.gmra.mrb[0].mxu0 %v520
  %v882 = vpop.f32.mrb[0].mxu0
  %v883 = vadd.f32 0.0, %v882
  %v884 = vpop.f32.mrb[0].mxu0
  %v885 = vpop.f32.mrb[0].mxu0
  %v886 = vadd.f32 0.0, %v885
  %v887 = vpop.f32.mrb[0].mxu0
  %888 = vmatprep.mubr.bf16.mxu0 %v524
  %889 = vmatmul.mubr.bf16.gmra.mrb[0].mxu0 %v523
  %v890 = vpop.f32.mrb[0].mxu0
  %v891 = vadd.f32 0.0, %v890
  %v892 = vpop.f32.mrb[0].mxu0
  %v893 = vpop.f32.mrb[0].mxu0
  %v894 = vadd.f32 0.0, %v893
  %v895 = vpop.f32.mrb[0].mxu0
  %896 = vmatprep.mubr.bf16.mxu0 %v527
  %897 = vmatmul.mubr.bf16.gmra.mrb[0].mxu0 %v526
  %v898 = vpop.f32.mrb[0].mxu0
  %v899 = vadd.f32 0.0, %v898
  %v900 = vpop.f32.mrb[0].mxu0
  %v901 = vpop.f32.mrb[0].mxu0
  %v902 = vadd.f32 0.0, %v901
  %v903 = vpop.f32.mrb[0].mxu0
  %904 = vmatprep.mubr.bf16.mxu0 %v530
  %905 = vmatmul.mubr.bf16.gmra.mrb[0].mxu0 %v529
  %v906 = vpop.f32.mrb[0].mxu0
  %v907 = vadd.f32 0.0, %v906
  %v908 = vpop.f32.mrb[0].mxu0
  %v909 = vpop.f32.mrb[0].mxu0
  %v910 = vadd.f32 0.0, %v909
  %v911 = vpop.f32.mrb[0].mxu0
  %912 = vmatprep.mubr.bf16.mxu0 %v533
  %913 = vmatmul.mubr.bf16.gmra.mrb[0].mxu0 %v532
  %v914 = vpop.f32.mrb[0].mxu0
  %v915 = vadd.f32 0.0, %v914
  %v916 = vpop.f32.mrb[0].mxu0
  %v917 = vpop.f32.mrb[0].mxu0
  %v918 = vadd.f32 0.0, %v917
  %v919 = vpop.f32.mrb[0].mxu0
  %920 = vmatprep.mubr.bf16.mxu0 %v536
  %921 = vmatmul.mubr.bf16.gmra.mrb[0].mxu0 %v535
  %v922 = vpop.f32.mrb[0].mxu0
  %v923 = vadd.f32 0.0, %v922
  %v924 = vpop.f32.mrb[0].mxu0
  %v925 = vpop.f32.mrb[0].mxu0
  %v926 = vadd.f32 0.0, %v925
  %v927 = vpop.f32.mrb[0].mxu0
  %928 = vmatprep.mubr.bf16.mxu0 %v539
  %929 = vmatmul.mubr.bf16.gmra.mrb[0].mxu0 %v538
  %v930 = vpop.f32.mrb[0].mxu0
  %v931 = vadd.f32 0.0, %v930
  %v932 = vpop.f32.mrb[0].mxu0
  %v933 = vpop.f32.mrb[0].mxu0
  %v934 = vadd.f32 0.0, %v933
  %v935 = vpop.f32.mrb[0].mxu0
  %936 = vmatprep.mubr.bf16.mxu0 %v542
  %937 = vmatmul.mubr.bf16.gmra.mrb[0].mxu0 %v541
  %v938 = vpop.f32.mrb[0].mxu0
  %v939 = vadd.f32 0.0, %v938
  %v940 = vpop.f32.mrb[0].mxu0
  %v941 = vpop.f32.mrb[0].mxu0
  %v942 = vadd.f32 0.0, %v941
  %v943 = vpop.f32.mrb[0].mxu0
  %944 = vmatprep.mubr.bf16.mxu0 %v545
  %945 = vmatmul.mubr.bf16.gmra.mrb[0].mxu0 %v544
  %v946 = vpop.f32.mrb[0].mxu0
  %v947 = vadd.f32 0.0, %v946
  %v948 = vpop.f32.mrb[0].mxu0
  %v949 = vpop.f32.mrb[0].mxu0
  %v950 = vadd.f32 0.0, %v949
  %v951 = vpop.f32.mrb[0].mxu0
  %952 = vmatprep.mubr.bf16.mxu0 %v548
  %953 = vmatmul.mubr.bf16.gmra.mrb[0].mxu0 %v547
  %v954 = vpop.f32.mrb[0].mxu0
  %v955 = vadd.f32 0.0, %v954
  %v956 = vpop.f32.mrb[0].mxu0
  %v957 = vpop.f32.mrb[0].mxu0
  %v958 = vadd.f32 0.0, %v957
  %v959 = vpop.f32.mrb[0].mxu0
  %960 = vmatprep.mubr.bf16.mxu0 %v551
  %961 = vmatmul.mubr.bf16.gmra.mrb[0].mxu0 %v550
  %v962 = vpop.f32.mrb[0].mxu0
  %v963 = vadd.f32 0.0, %v962
  %v964 = vpop.f32.mrb[0].mxu0
  %v965 = vpop.f32.mrb[0].mxu0
  %v966 = vadd.f32 0.0, %v965
  %v967 = vpop.f32.mrb[0].mxu0
  %968 = vmatprep.mubr.bf16.mxu0 %v554
  %969 = vmatmul.mubr.bf16.gmra.mrb[0].mxu0 %v553
  %v970 = vpop.f32.mrb[0].mxu0
  %v971 = vadd.f32 0.0, %v970
  %v972 = vpop.f32.mrb[0].mxu0
  %v973 = vpop.f32.mrb[0].mxu0
  %v974 = vadd.f32 0.0, %v973
  %v975 = vpop.f32.mrb[0].mxu0
  %976 = vmatprep.mubr.bf16.mxu0 %v557
  %977 = vmatmul.mubr.bf16.gmra.mrb[0].mxu0 %v556
  %v978 = vpop.f32.mrb[0].mxu0
  %v979 = vadd.f32 0.0, %v978
  %v980 = vpop.f32.mrb[0].mxu0
  %v981 = vpop.f32.mrb[0].mxu0
  %v982 = vadd.f32 0.0, %v981
  %v983 = vpop.f32.mrb[0].mxu0
  %984 = vmatprep.mubr.bf16.mxu0 %v560
  %985 = vmatmul.mubr.bf16.gmra.mrb[0].mxu0 %v559
  %v986 = vpop.f32.mrb[0].mxu0
  %v987 = vadd.f32 0.0, %v986
  %v988 = vpop.f32.mrb[0].mxu0
  %v989 = vpop.f32.mrb[0].mxu0
  %v990 = vadd.f32 0.0, %v989
  %v991 = vpop.f32.mrb[0].mxu0
  %992 = vmatprep.mubr.bf16.mxu0 %v563
  %993 = vmatmul.mubr.bf16.gmra.mrb[0].mxu0 %v562
  %v994 = vpop.f32.mrb[0].mxu0
  %v995 = vadd.f32 0.0, %v994
  %v996 = vpop.f32.mrb[0].mxu0
  %v997 = vpop.f32.mrb[0].mxu0
  %v998 = vadd.f32 0.0, %v997
  %v999 = vpop.f32.mrb[0].mxu0
  %1000 = vmatprep.mubr.bf16.mxu0 %v566
  %1001 = vmatmul.mubr.bf16.gmra.mrb[0].mxu0 %v565
  %v1002 = vpop.f32.mrb[0].mxu0
  %v1003 = vadd.f32 0.0, %v1002
  %v1004 = vpop.f32.mrb[0].mxu0
  %v1005 = vpop.f32.mrb[0].mxu0
  %v1006 = vadd.f32 0.0, %v1005
  %v1007 = vpop.f32.mrb[0].mxu0
  %1008 = vdwg.mxu0
  %1009 = vmatprep.subr.bf16.mxu0 0
  %1010 = vmatpush1.bf16.msra.mxu0 %v752
  %1011 = vmatprep.subr.bf16.mxu0 0
  %1012 = vmatpush1.bf16.msra.mxu0 %v753
  %1013 = vmatprep.subr.bf16.mxu0 0
  %1014 = vmatpush1.bf16.msra.mxu0 %v754
  %1015 = vmatprep.subr.bf16.mxu0 0
  %1016 = vmatpush1.bf16.msra.mxu0 %v755
  %1017 = vmatprep.subr.bf16.mxu0 0
  %1018 = vmatpush1.bf16.msra.mxu0 %v756
  %1019 = vmatprep.subr.bf16.mxu0 0
  %1020 = vmatpush1.bf16.msra.mxu0 %v757
  %1021 = vmatprep.subr.bf16.mxu0 0
  %1022 = vmatpush1.bf16.msra.mxu0 %v758
  %1023 = vmatprep.subr.bf16.mxu0 0
  %1024 = vmatpush1.bf16.msra.mxu0 %v759
  %1025 = vmatprep.subr.bf16.mxu0 0
  %1026 = vmatpush1.bf16.msra.mxu0 0
  %1027 = vmatprep.subr.bf16.mxu0 0
  %1028 = vmatpush1.bf16.msra.mxu0 0
  %1029 = vmatprep.subr.bf16.mxu0 0
  %1030 = vmatpush1.bf16.msra.mxu0 0
  %1031 = vmatprep.subr.bf16.mxu0 0
  %1032 = vmatpush1.bf16.msra.mxu0 0
  %1033 = vmatprep.subr.bf16.mxu0 0
  %1034 = vmatpush1.bf16.msra.mxu0 0
  %1035 = vmatprep.subr.bf16.mxu0 0
  %1036 = vmatpush1.bf16.msra.mxu0 0
  %1037 = vmatprep.subr.bf16.mxu0 0
  %1038 = vmatpush1.bf16.msra.mxu0 0
  %1039 = vmatprep.subr.bf16.mxu0 0
  %1040 = vmatpush1.bf16.msra.mxu0 0
  %1041 = vmatprep.mubr.bf16.mxu0 0
  %1042 = vmatmul.mubr.bf16.gmra.mrb[0].mxu0 %v498
  %v1043 = vpop.f32.mrb[0].mxu0
  %v1044 = vadd.f32 %v819, %v1043
  %v1045 = vpop.f32.mrb[0].mxu0
  %v1046 = vpop.f32.mrb[0].mxu0
  %v1047 = vadd.f32 %v822, %v1046
  %v1048 = vpop.f32.mrb[0].mxu0
  %1049 = vmatprep.mubr.bf16.mxu0 0
  %1050 = vmatmul.mubr.bf16.gmra.mrb[0].mxu0 %v501
  %v1051 = vpop.f32.mrb[0].mxu0
  %v1052 = vadd.f32 %v827, %v1051
  %v1053 = vpop.f32.mrb[0].mxu0
  %v1054 = vpop.f32.mrb[0].mxu0
  %v1055 = vadd.f32 %v830, %v1054
  %v1056 = vpop.f32.mrb[0].mxu0
  %1057 = vmatprep.mubr.bf16.mxu0 0
  %1058 = vmatmul.mubr.bf16.gmra.mrb[0].mxu0 %v504
  %v1059 = vpop.f32.mrb[0].mxu0
  %v1060 = vadd.f32 %v835, %v1059
  %v1061 = vpop.f32.mrb[0].mxu0
  %v1062 = vpop.f32.mrb[0].mxu0
  %v1063 = vadd.f32 %v838, %v1062
  %v1064 = vpop.f32.mrb[0].mxu0
  %1065 = vmatprep.mubr.bf16.mxu0 0
  %1066 = vmatmul.mubr.bf16.gmra.mrb[0].mxu0 %v507
  %v1067 = vpop.f32.mrb[0].mxu0
  %v1068 = vadd.f32 %v843, %v1067
  %v1069 = vpop.f32.mrb[0].mxu0
  %v1070 = vpop.f32.mrb[0].mxu0
  %v1071 = vadd.f32 %v846, %v1070
  %v1072 = vpop.f32.mrb[0].mxu0
  %1073 = vmatprep.mubr.bf16.mxu0 0
  %1074 = vmatmul.mubr.bf16.gmra.mrb[0].mxu0 %v510
  %v1075 = vpop.f32.mrb[0].mxu0
  %v1076 = vadd.f32 %v851, %v1075
  %v1077 = vpop.f32.mrb[0].mxu0
  %v1078 = vpop.f32.mrb[0].mxu0
  %v1079 = vadd.f32 %v854, %v1078
  %v1080 = vpop.f32.mrb[0].mxu0
  %1081 = vmatprep.mubr.bf16.mxu0 0
  %1082 = vmatmul.mubr.bf16.gmra.mrb[0].mxu0 %v513
  %v1083 = vpop.f32.mrb[0].mxu0
  %v1084 = vadd.f32 %v859, %v1083
  %v1085 = vpop.f32.mrb[0].mxu0
  %v1086 = vpop.f32.mrb[0].mxu0
  %v1087 = vadd.f32 %v862, %v1086
  %v1088 = vpop.f32.mrb[0].mxu0
  %1089 = vmatprep.mubr.bf16.mxu0 0
  %1090 = vmatmul.mubr.bf16.gmra.mrb[0].mxu0 %v516
  %v1091 = vpop.f32.mrb[0].mxu0
  %v1092 = vadd.f32 %v867, %v1091
  %v1093 = vpop.f32.mrb[0].mxu0
  %v1094 = vpop.f32.mrb[0].mxu0
  %v1095 = vadd.f32 %v870, %v1094
  %v1096 = vpop.f32.mrb[0].mxu0
  %1097 = vmatprep.mubr.bf16.mxu0 0
  %1098 = vmatmul.mubr.bf16.gmra.mrb[0].mxu0 %v519
  %v1099 = vpop.f32.mrb[0].mxu0
  %v1100 = vadd.f32 %v875, %v1099
  %v1101 = vpop.f32.mrb[0].mxu0
  %v1102 = vpop.f32.mrb[0].mxu0
  %v1103 = vadd.f32 %v878, %v1102
  %v1104 = vpop.f32.mrb[0].mxu0
  %1105 = vmatprep.mubr.bf16.mxu0 0
  %1106 = vmatmul.mubr.bf16.gmra.mrb[0].mxu0 %v522
  %v1107 = vpop.f32.mrb[0].mxu0
  %v1108 = vadd.f32 %v883, %v1107
  %v1109 = vpop.f32.mrb[0].mxu0
  %v1110 = vpop.f32.mrb[0].mxu0
  %v1111 = vadd.f32 %v886, %v1110
  %v1112 = vpop.f32.mrb[0].mxu0
  %1113 = vmatprep.mubr.bf16.mxu0 0
  %1114 = vmatmul.mubr.bf16.gmra.mrb[0].mxu0 %v525
  %v1115 = vpop.f32.mrb[0].mxu0
  %v1116 = vadd.f32 %v891, %v1115
  %v1117 = vpop.f32.mrb[0].mxu0
  %v1118 = vpop.f32.mrb[0].mxu0
  %v1119 = vadd.f32 %v894, %v1118
  %v1120 = vpop.f32.mrb[0].mxu0
  %1121 = vmatprep.mubr.bf16.mxu0 0
  %1122 = vmatmul.mubr.bf16.gmra.mrb[0].mxu0 %v528
  %v1123 = vpop.f32.mrb[0].mxu0
  %v1124 = vadd.f32 %v899, %v1123
  %v1125 = vpop.f32.mrb[0].mxu0
  %v1126 = vpop.f32.mrb[0].mxu0
  %v1127 = vadd.f32 %v902, %v1126
  %v1128 = vpop.f32.mrb[0].mxu0
  %1129 = vmatprep.mubr.bf16.mxu0 0
  %1130 = vmatmul.mubr.bf16.gmra.mrb[0].mxu0 %v531
  %v1131 = vpop.f32.mrb[0].mxu0
  %v1132 = vadd.f32 %v907, %v1131
  %v1133 = vpop.f32.mrb[0].mxu0
  %v1134 = vpop.f32.mrb[0].mxu0
  %v1135 = vadd.f32 %v910, %v1134
  %v1136 = vpop.f32.mrb[0].mxu0
  %1137 = vmatprep.mubr.bf16.mxu0 0
  %1138 = vmatmul.mubr.bf16.gmra.mrb[0].mxu0 %v534
  %v1139 = vpop.f32.mrb[0].mxu0
  %v1140 = vadd.f32 %v915, %v1139
  %v1141 = vpop.f32.mrb[0].mxu0
  %v1142 = vpop.f32.mrb[0].mxu0
  %v1143 = vadd.f32 %v918, %v1142
  %v1144 = vpop.f32.mrb[0].mxu0
  %1145 = vmatprep.mubr.bf16.mxu0 0
  %1146 = vmatmul.mubr.bf16.gmra.mrb[0].mxu0 %v537
  %v1147 = vpop.f32.mrb[0].mxu0
  %v1148 = vadd.f32 %v923, %v1147
  %v1149 = vpop.f32.mrb[0].mxu0
  %v1150 = vpop.f32.mrb[0].mxu0
  %v1151 = vadd.f32 %v926, %v1150
  %v1152 = vpop.f32.mrb[0].mxu0
  %1153 = vmatprep.mubr.bf16.mxu0 0
  %1154 = vmatmul.mubr.bf16.gmra.mrb[0].mxu0 %v540
  %v1155 = vpop.f32.mrb[0].mxu0
  %v1156 = vadd.f32 %v931, %v1155
  %v1157 = vpop.f32.mrb[0].mxu0
  %v1158 = vpop.f32.mrb[0].mxu0
  %v1159 = vadd.f32 %v934, %v1158
  %v1160 = vpop.f32.mrb[0].mxu0
  %1161 = vmatprep.mubr.bf16.mxu0 0
  %1162 = vmatmul.mubr.bf16.gmra.mrb[0].mxu0 %v543
  %v1163 = vpop.f32.mrb[0].mxu0
  %v1164 = vadd.f32 %v939, %v1163
  %v1165 = vpop.f32.mrb[0].mxu0
  %v1166 = vpop.f32.mrb[0].mxu0
  %v1167 = vadd.f32 %v942, %v1166
  %v1168 = vpop.f32.mrb[0].mxu0
  %1169 = vmatprep.mubr.bf16.mxu0 0
  %1170 = vmatmul.mubr.bf16.gmra.mrb[0].mxu0 %v546
  %v1171 = vpop.f32.mrb[0].mxu0
  %v1172 = vadd.f32 %v947, %v1171
  %v1173 = vpop.f32.mrb[0].mxu0
  %v1174 = vpop.f32.mrb[0].mxu0
  %v1175 = vadd.f32 %v950, %v1174
  %v1176 = vpop.f32.mrb[0].mxu0
  %1177 = vmatprep.mubr.bf16.mxu0 0
  %1178 = vmatmul.mubr.bf16.gmra.mrb[0].mxu0 %v549
  %v1179 = vpop.f32.mrb[0].mxu0
  %v1180 = vadd.f32 %v955, %v1179
  %v1181 = vpop.f32.mrb[0].mxu0
  %v1182 = vpop.f32.mrb[0].mxu0
  %v1183 = vadd.f32 %v958, %v1182
  %v1184 = vpop.f32.mrb[0].mxu0
  %1185 = vmatprep.mubr.bf16.mxu0 0
  %1186 = vmatmul.mubr.bf16.gmra.mrb[0].mxu0 %v552
  %v1187 = vpop.f32.mrb[0].mxu0
  %v1188 = vadd.f32 %v963, %v1187
  %v1189 = vpop.f32.mrb[0].mxu0
  %v1190 = vpop.f32.mrb[0].mxu0
  %v1191 = vadd.f32 %v966, %v1190
  %v1192 = vpop.f32.mrb[0].mxu0
  %1193 = vmatprep.mubr.bf16.mxu0 0
  %1194 = vmatmul.mubr.bf16.gmra.mrb[0].mxu0 %v555
  %v1195 = vpop.f32.mrb[0].mxu0
  %v1196 = vadd.f32 %v971, %v1195
  %v1197 = vpop.f32.mrb[0].mxu0
  %v1198 = vpop.f32.mrb[0].mxu0
  %v1199 = vadd.f32 %v974, %v1198
  %v1200 = vpop.f32.mrb[0].mxu0
  %1201 = vmatprep.mubr.bf16.mxu0 0
  %1202 = vmatmul.mubr.bf16.gmra.mrb[0].mxu0 %v558
  %v1203 = vpop.f32.mrb[0].mxu0
  %v1204 = vadd.f32 %v979, %v1203
  %v1205 = vpop.f32.mrb[0].mxu0
  %v1206 = vpop.f32.mrb[0].mxu0
  %v1207 = vadd.f32 %v982, %v1206
  %v1208 = vpop.f32.mrb[0].mxu0
  %1209 = vmatprep.mubr.bf16.mxu0 0
  %1210 = vmatmul.mubr.bf16.gmra.mrb[0].mxu0 %v561
  %v1211 = vpop.f32.mrb[0].mxu0
  %v1212 = vadd.f32 %v987, %v1211
  %v1213 = vpop.f32.mrb[0].mxu0
  %v1214 = vpop.f32.mrb[0].mxu0
  %v1215 = vadd.f32 %v990, %v1214
  %v1216 = vpop.f32.mrb[0].mxu0
  %1217 = vmatprep.mubr.bf16.mxu0 0
  %1218 = vmatmul.mubr.bf16.gmra.mrb[0].mxu0 %v564
  %v1219 = vpop.f32.mrb[0].mxu0
  %v1220 = vadd.f32 %v995, %v1219
  %v1221 = vpop.f32.mrb[0].mxu0
  %v1222 = vpop.f32.mrb[0].mxu0
  %v1223 = vadd.f32 %v998, %v1222
  %v1224 = vpop.f32.mrb[0].mxu0
  %1225 = vmatprep.mubr.bf16.mxu0 0
  %1226 = vmatmul.mubr.bf16.gmra.mrb[0].mxu0 %v567
  %v1227 = vpop.f32.mrb[0].mxu0
  %v1228 = vadd.f32 %v1003, %v1227
  %v1229 = vpop.f32.mrb[0].mxu0
  %v1230 = vpop.f32.mrb[0].mxu0
  %v1231 = vadd.f32 %v1006, %v1230
  %v1232 = vpop.f32.mrb[0].mxu0
  %1233 = vdwg.mxu0
  %v1234 = vadd.f32 %v64, %v1044
  %v1235 = vadd.f32 %v65, %v1047
  %v1236 = vadd.f32 %v66, %v1052
  %v1237 = vadd.f32 %v67, %v1055
  %v1238 = vadd.f32 %v68, %v1060
  %v1239 = vadd.f32 %v69, %v1063
  %v1240 = vadd.f32 %v70, %v1068
  %v1241 = vadd.f32 %v71, %v1071
  %v1242 = vadd.f32 %v72, %v1076
  %v1243 = vadd.f32 %v73, %v1079
  %v1244 = vadd.f32 %v74, %v1084
  %v1245 = vadd.f32 %v75, %v1087
  %v1246 = vadd.f32 %v76, %v1092
  %v1247 = vadd.f32 %v77, %v1095
  %v1248 = vadd.f32 %v78, %v1100
  %v1249 = vadd.f32 %v79, %v1103
  %v1250 = vadd.f32 %v80, %v1108
  %v1251 = vadd.f32 %v81, %v1111
  %v1252 = vadd.f32 %v82, %v1116
  %v1253 = vadd.f32 %v83, %v1119
  %v1254 = vadd.f32 %v84, %v1124
  %v1255 = vadd.f32 %v85, %v1127
  %v1256 = vadd.f32 %v86, %v1132
  %v1257 = vadd.f32 %v87, %v1135
  %v1258 = vadd.f32 %v88, %v1140
  %v1259 = vadd.f32 %v89, %v1143
  %v1260 = vadd.f32 %v90, %v1148
  %v1261 = vadd.f32 %v91, %v1151
  %v1262 = vadd.f32 %v92, %v1156
  %v1263 = vadd.f32 %v93, %v1159
  %v1264 = vadd.f32 %v94, %v1164
  %v1265 = vadd.f32 %v95, %v1167
  %v1266 = vadd.f32 %v96, %v1172
  %v1267 = vadd.f32 %v97, %v1175
  %v1268 = vadd.f32 %v98, %v1180
  %v1269 = vadd.f32 %v99, %v1183
  %v1270 = vadd.f32 %v100, %v1188
  %v1271 = vadd.f32 %v101, %v1191
  %v1272 = vadd.f32 %v102, %v1196
  %v1273 = vadd.f32 %v103, %v1199
  %v1274 = vadd.f32 %v104, %v1204
  %v1275 = vadd.f32 %v105, %v1207
  %v1276 = vadd.f32 %v106, %v1212
  %v1277 = vadd.f32 %v107, %v1215
  %v1278 = vadd.f32 %v108, %v1220
  %v1279 = vadd.f32 %v109, %v1223
  %v1280 = vadd.f32 %v110, %v1228
  %v1281 = vadd.f32 %v111, %v1231
  %1282 = vst [vmem:[#allocation2] sm:$0xff] %v1234
  %1283 = vst [vmem:[#allocation2 + $0x8] sm:$0xff] %v1235
  %1284 = vst [vmem:[#allocation2 + $0x10] sm:$0xff] %v1236
  %1285 = vst [vmem:[#allocation2 + $0x18] sm:$0xff] %v1237
  %1286 = vst [vmem:[#allocation2 + $0x20] sm:$0xff] %v1238
  %1287 = vst [vmem:[#allocation2 + $0x28] sm:$0xff] %v1239
  %1288 = vst [vmem:[#allocation2 + $0x30] sm:$0xff] %v1240
  %1289 = vst [vmem:[#allocation2 + $0x38] sm:$0xff] %v1241
  %1290 = vst [vmem:[#allocation2 + $0x40] sm:$0xff] %v1242
  %1291 = vst [vmem:[#allocation2 + $0x48] sm:$0xff] %v1243
  %1292 = vst [vmem:[#allocation2 + $0x50] sm:$0xff] %v1244
  %1293 = vst [vmem:[#allocation2 + $0x58] sm:$0xff] %v1245
  %1294 = vst [vmem:[#allocation2 + $0x60] sm:$0xff] %v1246
  %1295 = vst [vmem:[#allocation2 + $0x68] sm:$0xff] %v1247
  %1296 = vst [vmem:[#allocation2 + $0x70] sm:$0xff] %v1248
  %1297 = vst [vmem:[#allocation2 + $0x78] sm:$0xff] %v1249
  %1298 = vst [vmem:[#allocation2 + $0x80] sm:$0xff] %v1250
  %1299 = vst [vmem:[#allocation2 + $0x88] sm:$0xff] %v1251
  %1300 = vst [vmem:[#allocation2 + $0x90] sm:$0xff] %v1252
  %1301 = vst [vmem:[#allocation2 + $0x98] sm:$0xff] %v1253
  %1302 = vst [vmem:[#allocation2 + $0xa0] sm:$0xff] %v1254
  %1303 = vst [vmem:[#allocation2 + $0xa8] sm:$0xff] %v1255
  %1304 = vst [vmem:[#allocation2 + $0xb0] sm:$0xff] %v1256
  %1305 = vst [vmem:[#allocation2 + $0xb8] sm:$0xff] %v1257
  %1306 = vst [vmem:[#allocation2 + $0xc0] sm:$0xff] %v1258
  %1307 = vst [vmem:[#allocation2 + $0xc8] sm:$0xff] %v1259
  %1308 = vst [vmem:[#allocation2 + $0xd0] sm:$0xff] %v1260
  %1309 = vst [vmem:[#allocation2 + $0xd8] sm:$0xff] %v1261
  %1310 = vst [vmem:[#allocation2 + $0xe0] sm:$0xff] %v1262
  %1311 = vst [vmem:[#allocation2 + $0xe8] sm:$0xff] %v1263
  %1312 = vst [vmem:[#allocation2 + $0xf0] sm:$0xff] %v1264
  %1313 = vst [vmem:[#allocation2 + $0xf8] sm:$0xff] %v1265
  %1314 = vst [vmem:[#allocation2 + $0x100] sm:$0xff] %v1266
  %1315 = vst [vmem:[#allocation2 + $0x108] sm:$0xff] %v1267
  %1316 = vst [vmem:[#allocation2 + $0x110] sm:$0xff] %v1268
  %1317 = vst [vmem:[#allocation2 + $0x118] sm:$0xff] %v1269
  %1318 = vst [vmem:[#allocation2 + $0x120] sm:$0xff] %v1270
  %1319 = vst [vmem:[#allocation2 + $0x128] sm:$0xff] %v1271
  %1320 = vst [vmem:[#allocation2 + $0x130] sm:$0xff] %v1272
  %1321 = vst [vmem:[#allocation2 + $0x138] sm:$0xff] %v1273
  %1322 = vst [vmem:[#allocation2 + $0x140] sm:$0xff] %v1274
  %1323 = vst [vmem:[#allocation2 + $0x148] sm:$0xff] %v1275
  %1324 = vst [vmem:[#allocation2 + $0x150] sm:$0xff] %v1276
  %1325 = vst [vmem:[#allocation2 + $0x158] sm:$0xff] %v1277
  %1326 = vst [vmem:[#allocation2 + $0x160] sm:$0xff] %v1278
  %1327 = vst [vmem:[#allocation2 + $0x168] sm:$0xff] %v1279
  %1328 = vst [vmem:[#allocation2 + $0x170] sm:$0xff] %v1280
  %1329 = vst [vmem:[#allocation2 + $0x178] sm:$0xff] %v1281
  // Predicated region
  $region14: #{encoder_forward.3} parent=0 // pred_check
    %p1330 = pneg %p12
  $region15: #{encoder_forward.3} parent=0 // pred_check_branch
    %1332 = sbr.rel (%p1330) target = $region17
  $region16: #{encoder_forward.3} parent=0 // pred_region
    %v1333 = vld [vmem:[#allocation2] sm:$0xff]
    %v1334 = vld [vmem:[#allocation2 + $0x8] sm:$0xff]
    %v1335 = vld [vmem:[#allocation2 + $0x10] sm:$0xff]
    %v1336 = vld [vmem:[#allocation2 + $0x18] sm:$0xff]
    %v1337 = vld [vmem:[#allocation2 + $0x20] sm:$0xff]
    %v1338 = vld [vmem:[#allocation2 + $0x28] sm:$0xff]
    %v1339 = vld [vmem:[#allocation2 + $0x30] sm:$0xff]
    %v1340 = vld [vmem:[#allocation2 + $0x38] sm:$0xff]
    %v1341 = vld [vmem:[#allocation2 + $0x40] sm:$0xff]
    %v1342 = vld [vmem:[#allocation2 + $0x48] sm:$0xff]
    %v1343 = vld [vmem:[#allocation2 + $0x50] sm:$0xff]
    %v1344 = vld [vmem:[#allocation2 + $0x58] sm:$0xff]
    %v1345 = vld [vmem:[#allocation2 + $0x60] sm:$0xff]
    %v1346 = vld [vmem:[#allocation2 + $0x68] sm:$0xff]
    %v1347 = vld [vmem:[#allocation2 + $0x70] sm:$0xff]
    %v1348 = vld [vmem:[#allocation2 + $0x78] sm:$0xff]
    %v1349 = vld [vmem:[#allocation2 + $0x80] sm:$0xff]
    %v1350 = vld [vmem:[#allocation2 + $0x88] sm:$0xff]
    %v1351 = vld [vmem:[#allocation2 + $0x90] sm:$0xff]
    %v1352 = vld [vmem:[#allocation2 + $0x98] sm:$0xff]
    %v1353 = vld [vmem:[#allocation2 + $0xa0] sm:$0xff]
    %v1354 = vld [vmem:[#allocation2 + $0xa8] sm:$0xff]
    %v1355 = vld [vmem:[#allocation2 + $0xb0] sm:$0xff]
    %v1356 = vld [vmem:[#allocation2 + $0xb8] sm:$0xff]
    %v1357 = vld [vmem:[#allocation2 + $0xc0] sm:$0xff]
    %v1358 = vld [vmem:[#allocation2 + $0xc8] sm:$0xff]
    %v1359 = vld [vmem:[#allocation2 + $0xd0] sm:$0xff]
    %v1360 = vld [vmem:[#allocation2 + $0xd8] sm:$0xff]
    %v1361 = vld [vmem:[#allocation2 + $0xe0] sm:$0xff]
    %v1362 = vld [vmem:[#allocation2 + $0xe8] sm:$0xff]
    %v1363 = vld [vmem:[#allocation2 + $0xf0] sm:$0xff]
    %v1364 = vld [vmem:[#allocation2 + $0xf8] sm:$0xff]
    %v1365 = vld [vmem:[#allocation2 + $0x100] sm:$0xff]
    %v1366 = vld [vmem:[#allocation2 + $0x108] sm:$0xff]
    %v1367 = vld [vmem:[#allocation2 + $0x110] sm:$0xff]
    %v1368 = vld [vmem:[#allocation2 + $0x118] sm:$0xff]
    %v1369 = vld [vmem:[#allocation2 + $0x120] sm:$0xff]
    %v1370 = vld [vmem:[#allocation2 + $0x128] sm:$0xff]
    %v1371 = vld [vmem:[#allocation2 + $0x130] sm:$0xff]
    %v1372 = vld [vmem:[#allocation2 + $0x138] sm:$0xff]
    %v1373 = vld [vmem:[#allocation2 + $0x140] sm:$0xff]
    %v1374 = vld [vmem:[#allocation2 + $0x148] sm:$0xff]
    %v1375 = vld [vmem:[#allocation2 + $0x150] sm:$0xff]
    %v1376 = vld [vmem:[#allocation2 + $0x158] sm:$0xff]
    %v1377 = vld [vmem:[#allocation2 + $0x160] sm:$0xff]
    %v1378 = vld [vmem:[#allocation2 + $0x168] sm:$0xff]
    %v1379 = vld [vmem:[#allocation2 + $0x170] sm:$0xff]
    %v1380 = vld [vmem:[#allocation2 + $0x178] sm:$0xff]
    %1381 = vst [vmem:[%s2] sm:$0xff] %v1333
    %1382 = vst [vmem:[%s2 + $0x8] sm:$0xff] %v1334
    %1383 = vst [vmem:[%s2 + $0x10] sm:$0xff] %v1335
    %1384 = vst [vmem:[%s2 + $0x18] sm:$0xff] %v1336
    %1385 = vst [vmem:[%s2 + $0x20] sm:$0xff] %v1337
    %1386 = vst [vmem:[%s2 + $0x28] sm:$0xff] %v1338
    %1387 = vst [vmem:[%s2 + $0x30] sm:$0xff] %v1339
    %1388 = vst [vmem:[%s2 + $0x38] sm:$0xff] %v1340
    %1389 = vst [vmem:[%s2 + $0x40] sm:$0xff] %v1341
    %1390 = vst [vmem:[%s2 + $0x48] sm:$0xff] %v1342
    %1391 = vst [vmem:[%s2 + $0x50] sm:$0xff] %v1343
    %1392 = vst [vmem:[%s2 + $0x58] sm:$0xff] %v1344
    %1393 = vst [vmem:[%s2 + $0x60] sm:$0xff] %v1345
    %1394 = vst [vmem:[%s2 + $0x68] sm:$0xff] %v1346
    %1395 = vst [vmem:[%s2 + $0x70] sm:$0xff] %v1347
    %1396 = vst [vmem:[%s2 + $0x78] sm:$0xff] %v1348
    %1397 = vst [vmem:[%s2 + $0x80] sm:$0xff] %v1349
    %1398 = vst [vmem:[%s2 + $0x88] sm:$0xff] %v1350
    %1399 = vst [vmem:[%s2 + $0x90] sm:$0xff] %v1351
    %1400 = vst [vmem:[%s2 + $0x98] sm:$0xff] %v1352
    %1401 = vst [vmem:[%s2 + $0xa0] sm:$0xff] %v1353
    %1402 = vst [vmem:[%s2 + $0xa8] sm:$0xff] %v1354
    %1403 = vst [vmem:[%s2 + $0xb0] sm:$0xff] %v1355
    %1404 = vst [vmem:[%s2 + $0xb8] sm:$0xff] %v1356
    %1405 = vst [vmem:[%s2 + $0xc0] sm:$0xff] %v1357
    %1406 = vst [vmem:[%s2 + $0xc8] sm:$0xff] %v1358
    %1407 = vst [vmem:[%s2 + $0xd0] sm:$0xff] %v1359
    %1408 = vst [vmem:[%s2 + $0xd8] sm:$0xff] %v1360
    %1409 = vst [vmem:[%s2 + $0xe0] sm:$0xff] %v1361
    %1410 = vst [vmem:[%s2 + $0xe8] sm:$0xff] %v1362
    %1411 = vst [vmem:[%s2 + $0xf0] sm:$0xff] %v1363
    %1412 = vst [vmem:[%s2 + $0xf8] sm:$0xff] %v1364
    %1413 = vst [vmem:[%s2 + $0x100] sm:$0xff] %v1365
    %1414 = vst [vmem:[%s2 + $0x108] sm:$0xff] %v1366
    %1415 = vst [vmem:[%s2 + $0x110] sm:$0xff] %v1367
    %1416 = vst [vmem:[%s2 + $0x118] sm:$0xff] %v1368
    %1417 = vst [vmem:[%s2 + $0x120] sm:$0xff] %v1369
    %1418 = vst [vmem:[%s2 + $0x128] sm:$0xff] %v1370
    %1419 = vst [vmem:[%s2 + $0x130] sm:$0xff] %v1371
    %1420 = vst [vmem:[%s2 + $0x138] sm:$0xff] %v1372
    %1421 = vst [vmem:[%s2 + $0x140] sm:$0xff] %v1373
    %1422 = vst [vmem:[%s2 + $0x148] sm:$0xff] %v1374
    %1423 = vst [vmem:[%s2 + $0x150] sm:$0xff] %v1375
    %1424 = vst [vmem:[%s2 + $0x158] sm:$0xff] %v1376
    %1425 = vst [vmem:[%s2 + $0x160] sm:$0xff] %v1377
    %1426 = vst [vmem:[%s2 + $0x168] sm:$0xff] %v1378
    %1427 = vst [vmem:[%s2 + $0x170] sm:$0xff] %v1379
    %1428 = vst [vmem:[%s2 + $0x178] sm:$0xff] %v1380
  $region17: #{encoder_forward.3} parent=0 // pred_fallthru
    _
  // Predicated region
  $region18: #{encoder_forward.3} parent=0 // pred_check
    _
  $region19: #{encoder_forward.3} parent=0 // pred_check_branch
    %1430 = sbr.rel (0) target = $region21
  $region20: #{encoder_forward.3} parent=0 // pred_region
    _
  $region21: #{encoder_forward.3} parent=0 // pred_fallthru
    _
  // Predicated region
  $region22: #{encoder_forward.3} parent=0 // pred_check
    _
  $region23: #{encoder_forward.3} parent=0 // pred_check_branch
    %1432 = sbr.rel (0) target = $region25
  $region24: #{encoder_forward.3} parent=0 // pred_region
    _
  $region25: #{encoder_forward.3} parent=0 // pred_fallthru
    _

</llo_original>
